<compile_context>
chip_gen: v7x
topology: tpu7x:2x2x1
jax: 0.10.0
libtpu: 0.0.40
codegen_flags: <defaults>
</compile_context>

<pallas_src>
import functools

import numpy as np
import jax
import jax.numpy as jnp
from jax import lax
from jax.experimental import pallas as pl
from jax.experimental.pallas import tpu as pltpu

BN_EPS = 1e-5
K = 15      # Conv1d kernel_size (all three convs)
CP = 7      # Conv1d padding     (all three convs)


@functools.lru_cache(maxsize=None)
def _stage_constants(B, lin, last):
    """Host-side (trace-time) constants for one Conv->BN->ReLU->MaxPool stage.

    Layout: each batch element's length-`lin` sequence is zero padded by CP on
    both sides and the B padded segments are laid side by side on the lane axis
    (segment stride lpad = lin + 2*CP).  The stride-1 conv over the concatenated
    lanes has width wz = B*lpad - (K-1); lane b*lpad + t holds the stride-1 conv
    output at within-batch position t of batch b (valid for t < lin).

    Returns (y_pos, valid, sel):
      y_pos (1, wz) f32  -- 1 on lanes holding the stride-2 conv outputs
                            (used for the BatchNorm batch statistics).
      valid (1, wz) f32  -- 1 on lanes holding any in-batch stride-1 conv output
                            (everything else is zeroed before pooling).
      sel   (wz, wn) f32 -- 0/1 selection matrix applied AFTER the neighbour max:
          not last: picks lanes b*lpad + 4*u (conv stride-2 AND pool stride-2 in
                    one shot) and re-emits them in the next stage's padded layout
                    (wn = B*(lp + 2*CP)).
          last    : picks the same lanes and sums them per batch element
                    (wn = B); the 1/lp AdaptiveAvgPool1d(1) scaling is applied to
                    the f32 result inside the kernel.
    """
    lpad = lin + 2 * CP
    wz = B * lpad - (K - 1)
    lout = lin // 2                      # Conv1d(stride=2) output length
    lp = lout // 2                       # MaxPool1d(3,2,1) output length

    lane = np.arange(wz)
    seg = lane // lpad                   # batch element owning each lane
    off = lane - seg * lpad              # within-batch stride-1 conv position
    valid = off < lin
    y_pos = valid & (off % 2 == 0)

    if not last:
        lpn = lp + 2 * CP
        sel = np.zeros((wz, B * lpn), np.float32)
        for b in range(B):
            for u in range(lp):
                sel[b * lpad + 4 * u, b * lpn + CP + u] = 1.0
    else:
        sel = np.zeros((wz, B), np.float32)
        for b in range(B):
            for u in range(lp):
                sel[b * lpad + 4 * u, b] = 1.0

    return (y_pos.astype(np.float32)[None, :],
            valid.astype(np.float32)[None, :],
            sel)


def _make_kernel(B, L):
    """Returns the fused Conv1dNet forward kernel for static batch B, length L."""
    n_bn = (float(B * (L // 2)), float(B * (L // 8)), float(B * (L // 32)))
    inv_lp_last = 1.0 / float(L // 64)   # AdaptiveAvgPool1d(1) over lp = L//64

    def _stage(act, w_bf, gamma, beta, y_pos, valid, sel_bf, n, last):
        """Conv1d(k=15,s=2,p=7,bias=False) -> BN(train) -> ReLU -> MaxPool1d(3,2,1).

        act   : (Cin, W) f32, batch-concatenated padded lane layout.
        w_bf  : (Cout, K*Cin) bf16, tap-major columns (j*Cin + ci).
        sel_bf: (wz, wn) bf16 0/1 host constant (see _stage_constants).
        """
        cout = w_bf.shape[0]
        cin = act.shape[0]
        wz = sel_bf.shape[0]

        # ---- im2col in-register: K lane-shifted slices stacked along sublanes.
        # Multi-channel stages slice/concat in bf16 (half the data through the
        # slice path); the Cin=1 stage keeps f32-concat-then-cast (single-sublane
        # packed-dtype concat is the risky Mosaic layout case, and its patch
        # matrix is only 15 rows).
        if cin == 1:
            patches = jnp.concatenate([act[:, j:j + wz] for j in range(K)], axis=0)
            patches = patches.astype(jnp.bfloat16)
        else:
            act_bf = act.astype(jnp.bfloat16)
            patches = jnp.concatenate([act_bf[:, j:j + wz] for j in range(K)], axis=0)

        # ---- Conv1d as ONE bf16 MXU matmul (f32 accumulate); stride picked later.
        z = jnp.dot(w_bf, patches, preferred_element_type=jnp.float32)   # (Cout, wz)

        # ---- BatchNorm1d, train mode: batch stats over the stride-2 outputs only
        #      (host-precomputed y_pos mask), one pass (sum + sum of squares),
        #      biased variance, eps=1e-5, fused into a per-channel scale/shift.
        zm = z * y_pos
        s1 = jnp.sum(zm, axis=1, keepdims=True)                          # (Cout, 1)
        s2 = jnp.sum(zm * zm, axis=1, keepdims=True)
        mean = s1 / n
        var = jnp.maximum(s2 / n - mean * mean, 0.0)
        scale = gamma * lax.rsqrt(var + BN_EPS)
        shift = beta - mean * scale

        # ---- BN affine + ReLU; zero inter-batch / padding lanes before the pool.
        yr = jnp.maximum(z * scale + shift, 0.0) * valid

        # ---- MaxPool1d(3,2,1): neighbour max on the VPU.  Shift-by-2 preserves
        #      lane parity so only strided lanes matter; zero edge fill matches
        #      PyTorch's -inf pad because the pooled data is post-ReLU >= 0.
        zc = jnp.zeros((cout, 2), jnp.float32)
        sl = jnp.concatenate([yr[:, 2:], zc], axis=1)                    # yr[l + 2]
        sr = jnp.concatenate([zc, yr[:, :-2]], axis=1)                   # yr[l - 2]
        m = jnp.maximum(jnp.maximum(yr, sl), sr).astype(jnp.bfloat16)

        # ---- Host-precomputed 0/1 selection matmul in bf16 (f32 accumulate):
        #      conv stride-2 + pool stride-2 pick, re-emitted in the next stage's
        #      padded layout, or summed per batch element for the last stage.
        out = jnp.dot(m, sel_bf, preferred_element_type=jnp.float32)
        if last:
            out = out * inv_lp_last                                      # (Cout, B)
        return out

    def kernel(x_ref,
               w1_ref, g1_ref, b1_ref, yp1_ref, va1_ref, sel1_ref,
               w2_ref, g2_ref, b2_ref, yp2_ref, va2_ref, sel2_ref,
               w3_ref, g3_ref, b3_ref, yp3_ref, va3_ref, sel3_ref,
               wfc_ref, bfc_ref, out_ref):
        a = x_ref[...]                                                   # (1, B*(L+14))
        a = _stage(a, w1_ref[...], g1_ref[...], b1_ref[...],
                   yp1_ref[...], va1_ref[...], sel1_ref[...], n_bn[0], False)
        a = _stage(a, w2_ref[...], g2_ref[...], b2_ref[...],
                   yp2_ref[...], va2_ref[...], sel2_ref[...], n_bn[1], False)
        a = _stage(a, w3_ref[...], g3_ref[...], b3_ref[...],
                   yp3_ref[...], va3_ref[...], sel3_ref[...], n_bn[2], True)  # (32, B)
        # Linear head, computed transposed (classes on sublanes, batch on lanes),
        # bf16 operands with f32 accumulation; the wrapper transposes back.
        out_ref[...] = (jnp.dot(wfc_ref[...], a.astype(jnp.bfloat16),
                                preferred_element_type=jnp.float32) + bfc_ref[...])

    return kernel


def conv1dnet_forward(x, params):
    """Pallas forward pass for Conv1dNet.  x: (B, 1, L) float32 (PyTorch NCL)."""
    B, cin, L = x.shape
    assert cin == 1, "Conv1dNet takes single-channel input"
    assert L % 64 == 0, "L must survive three (stride-2 conv + stride-2 pool) stages"
    num_classes = params['fc_w'].shape[0]

    # Host-side prep (cheap, fuses under jit): pad each sequence by 7 on both
    # sides and lay the B padded segments side by side on the lane axis.
    xp = jnp.pad(x.astype(jnp.float32), ((0, 0), (0, 0), (CP, CP)))     # (B, 1, L+14)
    xcat = jnp.transpose(xp, (1, 0, 2)).reshape(cin, B * (L + 2 * CP))

    def wmat(w):    # (Cout, Cin, K) -> (Cout, K*Cin), tap-major (matches im2col)
        co, ci, k = w.shape
        return jnp.transpose(w, (0, 2, 1)).reshape(co, k * ci).astype(jnp.bfloat16)

    def col(v):
        return v.reshape(-1, 1).astype(jnp.float32)

    # Trace-time (numpy) selection / mask constants, one triple per stage.
    stage_consts = []
    for i, lin in enumerate((L, L // 4, L // 16)):
        y_pos, valid, sel = _stage_constants(B, lin, i == 2)
        stage_consts.append((jnp.asarray(y_pos), jnp.asarray(valid),
                             jnp.asarray(sel, dtype=jnp.bfloat16)))      # 0/1 exact

    args = (xcat,
            wmat(params['conv1_w']), col(params['bn1_gamma']), col(params['bn1_beta']),
            *stage_consts[0],
            wmat(params['conv2_w']), col(params['bn2_gamma']), col(params['bn2_beta']),
            *stage_consts[1],
            wmat(params['conv3_w']), col(params['bn3_gamma']), col(params['bn3_beta']),
            *stage_consts[2],
            params['fc_w'].astype(jnp.bfloat16), col(params['fc_b']))

    vmem = pl.BlockSpec(memory_space=pltpu.MemorySpace.VMEM)
    # Single fused program, no grid: VMEM footprint is well under 1 MiB at these
    # sizes (stage-1 sel, the largest constant, is ~160 KiB in bf16).  For large
    # B/L raise vmem_limit_bytes and see the TODOs at the top of the file.
    out_t = pl.pallas_call(
        _make_kernel(B, L),
        out_shape=jax.ShapeDtypeStruct((num_classes, B), jnp.float32),
        in_specs=[vmem] * len(args),
        out_specs=vmem,
    )(*args)
    return out_t.T                                                       # (B, classes)


def init_params(key, num_classes):
    ks = jax.random.split(key, 5)
    p = {
        'conv1_w': 0.1 * jax.random.normal(ks[0], (8, 1, 15), jnp.float32),
        'conv2_w': 0.1 * jax.random.normal(ks[1], (16, 8, 15), jnp.float32),
        'conv3_w': 0.1 * jax.random.normal(ks[2], (32, 16, 15), jnp.float32),
        'fc_w': 0.1 * jax.random.normal(ks[3], (num_classes, 32), jnp.float32),
        'fc_b': 0.1 * jax.random.normal(ks[4], (num_classes,), jnp.float32),
    }
    for i, c in ((1, 8), (2, 16), (3, 32)):      # PyTorch BatchNorm1d defaults
        p[f'bn{i}_gamma'] = jnp.ones((c,), jnp.float32)
        p[f'bn{i}_beta'] = jnp.zeros((c,), jnp.float32)
    return p


if __name__ == "__main__":
    num_classes = 10
    B, Cin, L = 2, 1, 256                        # (B, C, L) -- PyTorch NCL layout

    key = jax.random.PRNGKey(0)
    kx, kp = jax.random.split(key)
    x = jax.random.normal(kx, (B, Cin, L), jnp.float32)
    params = init_params(kp, num_classes)

    fwd = jax.jit(conv1dnet_forward)
    out = jax.block_until_ready(fwd(x, params))
    assert out.shape == (B, num_classes), out.shape
    assert bool(jnp.all(jnp.isfinite(out)))
    print("KERNEL_OK")
</pallas_src>

<mosaic_0001>
module attributes {stable_mosaic.version = 11 : i64} {
  func.func @kernel(%arg0: memref<1x540xf32, #tpu.memory_space<vmem>>, %arg1: memref<8x15xbf16, #tpu.memory_space<vmem>>, %arg2: memref<8x1xf32, #tpu.memory_space<vmem>>, %arg3: memref<8x1xf32, #tpu.memory_space<vmem>>, %arg4: memref<1x526xf32, #tpu.memory_space<vmem>>, %arg5: memref<1x526xf32, #tpu.memory_space<vmem>>, %arg6: memref<526x156xbf16, #tpu.memory_space<vmem>>, %arg7: memref<16x120xbf16, #tpu.memory_space<vmem>>, %arg8: memref<16x1xf32, #tpu.memory_space<vmem>>, %arg9: memref<16x1xf32, #tpu.memory_space<vmem>>, %arg10: memref<1x142xf32, #tpu.memory_space<vmem>>, %arg11: memref<1x142xf32, #tpu.memory_space<vmem>>, %arg12: memref<142x60xbf16, #tpu.memory_space<vmem>>, %arg13: memref<32x240xbf16, #tpu.memory_space<vmem>>, %arg14: memref<32x1xf32, #tpu.memory_space<vmem>>, %arg15: memref<32x1xf32, #tpu.memory_space<vmem>>, %arg16: memref<1x46xf32, #tpu.memory_space<vmem>>, %arg17: memref<1x46xf32, #tpu.memory_space<vmem>>, %arg18: memref<46x2xbf16, #tpu.memory_space<vmem>>, %arg19: memref<10x32xbf16, #tpu.memory_space<vmem>>, %arg20: memref<10x1xf32, #tpu.memory_space<vmem>>, %arg21: memref<10x2xf32, #tpu.memory_space<vmem>>) attributes {dimension_semantics = [], scalar_prefetch = 0 : i64, scratch_operands = 0 : i64, tpu.core_type = #tpu.core_type<tc>} {
    %c0 = arith.constant 0 : index
    %c0_0 = arith.constant 0 : index
    %0 = vector.load %arg0[%c0, %c0_0] : memref<1x540xf32, #tpu.memory_space<vmem>>, vector<1x540xf32>
    %c0_1 = arith.constant 0 : index
    %c0_2 = arith.constant 0 : index
    %1 = vector.load %arg1[%c0_1, %c0_2] : memref<8x15xbf16, #tpu.memory_space<vmem>>, vector<8x15xbf16>
    %c0_3 = arith.constant 0 : index
    %c0_4 = arith.constant 0 : index
    %2 = vector.load %arg2[%c0_3, %c0_4] : memref<8x1xf32, #tpu.memory_space<vmem>>, vector<8x1xf32>
    %c0_5 = arith.constant 0 : index
    %c0_6 = arith.constant 0 : index
    %3 = vector.load %arg3[%c0_5, %c0_6] : memref<8x1xf32, #tpu.memory_space<vmem>>, vector<8x1xf32>
    %c0_7 = arith.constant 0 : index
    %c0_8 = arith.constant 0 : index
    %4 = vector.load %arg4[%c0_7, %c0_8] : memref<1x526xf32, #tpu.memory_space<vmem>>, vector<1x526xf32>
    %c0_9 = arith.constant 0 : index
    %c0_10 = arith.constant 0 : index
    %5 = vector.load %arg5[%c0_9, %c0_10] : memref<1x526xf32, #tpu.memory_space<vmem>>, vector<1x526xf32>
    %c0_11 = arith.constant 0 : index
    %c0_12 = arith.constant 0 : index
    %6 = vector.load %arg6[%c0_11, %c0_12] : memref<526x156xbf16, #tpu.memory_space<vmem>>, vector<526x156xbf16>
    %7 = vector.extract_strided_slice %0 {offsets = [0, 0], sizes = [1, 526], strides = [1, 1]} : vector<1x540xf32> to vector<1x526xf32>
    %8 = vector.extract_strided_slice %0 {offsets = [0, 1], sizes = [1, 526], strides = [1, 1]} : vector<1x540xf32> to vector<1x526xf32>
    %9 = vector.extract_strided_slice %0 {offsets = [0, 2], sizes = [1, 526], strides = [1, 1]} : vector<1x540xf32> to vector<1x526xf32>
    %10 = vector.extract_strided_slice %0 {offsets = [0, 3], sizes = [1, 526], strides = [1, 1]} : vector<1x540xf32> to vector<1x526xf32>
    %11 = vector.extract_strided_slice %0 {offsets = [0, 4], sizes = [1, 526], strides = [1, 1]} : vector<1x540xf32> to vector<1x526xf32>
    %12 = vector.extract_strided_slice %0 {offsets = [0, 5], sizes = [1, 526], strides = [1, 1]} : vector<1x540xf32> to vector<1x526xf32>
    %13 = vector.extract_strided_slice %0 {offsets = [0, 6], sizes = [1, 526], strides = [1, 1]} : vector<1x540xf32> to vector<1x526xf32>
    %14 = vector.extract_strided_slice %0 {offsets = [0, 7], sizes = [1, 526], strides = [1, 1]} : vector<1x540xf32> to vector<1x526xf32>
    %15 = vector.extract_strided_slice %0 {offsets = [0, 8], sizes = [1, 526], strides = [1, 1]} : vector<1x540xf32> to vector<1x526xf32>
    %16 = vector.extract_strided_slice %0 {offsets = [0, 9], sizes = [1, 526], strides = [1, 1]} : vector<1x540xf32> to vector<1x526xf32>
    %17 = vector.extract_strided_slice %0 {offsets = [0, 10], sizes = [1, 526], strides = [1, 1]} : vector<1x540xf32> to vector<1x526xf32>
    %18 = vector.extract_strided_slice %0 {offsets = [0, 11], sizes = [1, 526], strides = [1, 1]} : vector<1x540xf32> to vector<1x526xf32>
    %19 = vector.extract_strided_slice %0 {offsets = [0, 12], sizes = [1, 526], strides = [1, 1]} : vector<1x540xf32> to vector<1x526xf32>
    %20 = vector.extract_strided_slice %0 {offsets = [0, 13], sizes = [1, 526], strides = [1, 1]} : vector<1x540xf32> to vector<1x526xf32>
    %21 = vector.extract_strided_slice %0 {offsets = [0, 14], sizes = [1, 526], strides = [1, 1]} : vector<1x540xf32> to vector<1x526xf32>
    %22 = tpu.concatenate %7, %8, %9, %10, %11, %12, %13, %14, %15, %16, %17, %18, %19, %20, %21 in 0 : vector<1x526xf32>, vector<1x526xf32>, vector<1x526xf32>, vector<1x526xf32>, vector<1x526xf32>, vector<1x526xf32>, vector<1x526xf32>, vector<1x526xf32>, vector<1x526xf32>, vector<1x526xf32>, vector<1x526xf32>, vector<1x526xf32>, vector<1x526xf32>, vector<1x526xf32>, vector<1x526xf32> -> vector<15x526xf32>
    %23 = arith.truncf %22 : vector<15x526xf32> to vector<15x526xbf16>
    %cst = arith.constant dense<0.000000e+00> : vector<8x526xf32>
    %24 = tpu.matmul %1, %23, %cst {dimension_numbers = #tpu.dot_dimension_numbers<[1], [0], [0], [1], [0, 0, 1, 1], [], []>} : vector<8x15xbf16>, vector<15x526xbf16>, vector<8x526xf32> -> vector<8x526xf32>
    %25 = vector.broadcast %4 : vector<1x526xf32> to vector<8x526xf32>
    %26 = arith.mulf %24, %25 : vector<8x526xf32>
    %cst_13 = arith.constant dense<0.000000e+00> : vector<8xf32>
    %27 = vector.multi_reduction <add>, %26, %cst_13 [1] : vector<8x526xf32> to vector<8xf32>
    %28 = vector.shape_cast %27 : vector<8xf32> to vector<8x1xf32>
    %29 = arith.mulf %26, %26 : vector<8x526xf32>
    %cst_14 = arith.constant dense<0.000000e+00> : vector<8xf32>
    %30 = vector.multi_reduction <add>, %29, %cst_14 [1] : vector<8x526xf32> to vector<8xf32>
    %31 = vector.shape_cast %30 : vector<8xf32> to vector<8x1xf32>
    %cst_15 = arith.constant 2.560000e+02 : f32
    %32 = vector.broadcast %cst_15 : f32 to vector<8x1xf32>
    %33 = arith.divf %28, %32 : vector<8x1xf32>
    %cst_16 = arith.constant 2.560000e+02 : f32
    %34 = vector.broadcast %cst_16 : f32 to vector<8x1xf32>
    %35 = arith.divf %31, %34 : vector<8x1xf32>
    %36 = arith.mulf %33, %33 : vector<8x1xf32>
    %37 = arith.subf %35, %36 : vector<8x1xf32>
    %cst_17 = arith.constant 0.000000e+00 : f32
    %38 = vector.broadcast %cst_17 : f32 to vector<8x1xf32>
    %39 = arith.maximumf %37, %38 : vector<8x1xf32>
    %cst_18 = arith.constant 9.99999974E-6 : f32
    %40 = vector.broadcast %cst_18 : f32 to vector<8x1xf32>
    %41 = arith.addf %39, %40 : vector<8x1xf32>
    %42 = math.rsqrt %41 : vector<8x1xf32>
    %43 = arith.mulf %2, %42 : vector<8x1xf32>
    %44 = arith.mulf %33, %43 : vector<8x1xf32>
    %45 = arith.subf %3, %44 : vector<8x1xf32>
    %46 = vector.broadcast %43 : vector<8x1xf32> to vector<8x526xf32>
    %47 = arith.mulf %24, %46 : vector<8x526xf32>
    %48 = vector.broadcast %45 : vector<8x1xf32> to vector<8x526xf32>
    %49 = arith.addf %47, %48 : vector<8x526xf32>
    %cst_19 = arith.constant 0.000000e+00 : f32
    %50 = vector.broadcast %cst_19 : f32 to vector<8x526xf32>
    %51 = arith.maximumf %49, %50 : vector<8x526xf32>
    %52 = vector.broadcast %5 : vector<1x526xf32> to vector<8x526xf32>
    %53 = arith.mulf %51, %52 : vector<8x526xf32>
    %cst_20 = arith.constant 0.000000e+00 : f32
    %54 = vector.broadcast %cst_20 : f32 to vector<8x2xf32>
    %55 = vector.extract_strided_slice %53 {offsets = [0, 2], sizes = [8, 524], strides = [1, 1]} : vector<8x526xf32> to vector<8x524xf32>
    %56 = tpu.concatenate %55, %54 in 1 : vector<8x524xf32>, vector<8x2xf32> -> vector<8x526xf32>
    %57 = vector.extract_strided_slice %53 {offsets = [0, 0], sizes = [8, 524], strides = [1, 1]} : vector<8x526xf32> to vector<8x524xf32>
    %58 = tpu.concatenate %54, %57 in 1 : vector<8x2xf32>, vector<8x524xf32> -> vector<8x526xf32>
    %59 = arith.maximumf %53, %56 : vector<8x526xf32>
    %60 = arith.maximumf %59, %58 : vector<8x526xf32>
    %61 = arith.truncf %60 : vector<8x526xf32> to vector<8x526xbf16>
    %cst_21 = arith.constant dense<0.000000e+00> : vector<8x156xf32>
    %62 = tpu.matmul %61, %6, %cst_21 {dimension_numbers = #tpu.dot_dimension_numbers<[1], [0], [0], [1], [0, 0, 1, 1], [], []>} : vector<8x526xbf16>, vector<526x156xbf16>, vector<8x156xf32> -> vector<8x156xf32>
    %c0_22 = arith.constant 0 : index
    %c0_23 = arith.constant 0 : index
    %63 = vector.load %arg7[%c0_22, %c0_23] : memref<16x120xbf16, #tpu.memory_space<vmem>>, vector<16x120xbf16>
    %c0_24 = arith.constant 0 : index
    %c0_25 = arith.constant 0 : index
    %64 = vector.load %arg8[%c0_24, %c0_25] : memref<16x1xf32, #tpu.memory_space<vmem>>, vector<16x1xf32>
    %c0_26 = arith.constant 0 : index
    %c0_27 = arith.constant 0 : index
    %65 = vector.load %arg9[%c0_26, %c0_27] : memref<16x1xf32, #tpu.memory_space<vmem>>, vector<16x1xf32>
    %c0_28 = arith.constant 0 : index
    %c0_29 = arith.constant 0 : index
    %66 = vector.load %arg10[%c0_28, %c0_29] : memref<1x142xf32, #tpu.memory_space<vmem>>, vector<1x142xf32>
    %c0_30 = arith.constant 0 : index
    %c0_31 = arith.constant 0 : index
    %67 = vector.load %arg11[%c0_30, %c0_31] : memref<1x142xf32, #tpu.memory_space<vmem>>, vector<1x142xf32>
    %c0_32 = arith.constant 0 : index
    %c0_33 = arith.constant 0 : index
    %68 = vector.load %arg12[%c0_32, %c0_33] : memref<142x60xbf16, #tpu.memory_space<vmem>>, vector<142x60xbf16>
    %69 = arith.truncf %62 : vector<8x156xf32> to vector<8x156xbf16>
    %70 = vector.extract_strided_slice %69 {offsets = [0, 0], sizes = [8, 142], strides = [1, 1]} : vector<8x156xbf16> to vector<8x142xbf16>
    %71 = vector.extract_strided_slice %69 {offsets = [0, 1], sizes = [8, 142], strides = [1, 1]} : vector<8x156xbf16> to vector<8x142xbf16>
    %72 = vector.extract_strided_slice %69 {offsets = [0, 2], sizes = [8, 142], strides = [1, 1]} : vector<8x156xbf16> to vector<8x142xbf16>
    %73 = vector.extract_strided_slice %69 {offsets = [0, 3], sizes = [8, 142], strides = [1, 1]} : vector<8x156xbf16> to vector<8x142xbf16>
    %74 = vector.extract_strided_slice %69 {offsets = [0, 4], sizes = [8, 142], strides = [1, 1]} : vector<8x156xbf16> to vector<8x142xbf16>
    %75 = vector.extract_strided_slice %69 {offsets = [0, 5], sizes = [8, 142], strides = [1, 1]} : vector<8x156xbf16> to vector<8x142xbf16>
    %76 = vector.extract_strided_slice %69 {offsets = [0, 6], sizes = [8, 142], strides = [1, 1]} : vector<8x156xbf16> to vector<8x142xbf16>
    %77 = vector.extract_strided_slice %69 {offsets = [0, 7], sizes = [8, 142], strides = [1, 1]} : vector<8x156xbf16> to vector<8x142xbf16>
    %78 = vector.extract_strided_slice %69 {offsets = [0, 8], sizes = [8, 142], strides = [1, 1]} : vector<8x156xbf16> to vector<8x142xbf16>
    %79 = vector.extract_strided_slice %69 {offsets = [0, 9], sizes = [8, 142], strides = [1, 1]} : vector<8x156xbf16> to vector<8x142xbf16>
    %80 = vector.extract_strided_slice %69 {offsets = [0, 10], sizes = [8, 142], strides = [1, 1]} : vector<8x156xbf16> to vector<8x142xbf16>
    %81 = vector.extract_strided_slice %69 {offsets = [0, 11], sizes = [8, 142], strides = [1, 1]} : vector<8x156xbf16> to vector<8x142xbf16>
    %82 = vector.extract_strided_slice %69 {offsets = [0, 12], sizes = [8, 142], strides = [1, 1]} : vector<8x156xbf16> to vector<8x142xbf16>
    %83 = vector.extract_strided_slice %69 {offsets = [0, 13], sizes = [8, 142], strides = [1, 1]} : vector<8x156xbf16> to vector<8x142xbf16>
    %84 = vector.extract_strided_slice %69 {offsets = [0, 14], sizes = [8, 142], strides = [1, 1]} : vector<8x156xbf16> to vector<8x142xbf16>
    %85 = tpu.concatenate %70, %71, %72, %73, %74, %75, %76, %77, %78, %79, %80, %81, %82, %83, %84 in 0 : vector<8x142xbf16>, vector<8x142xbf16>, vector<8x142xbf16>, vector<8x142xbf16>, vector<8x142xbf16>, vector<8x142xbf16>, vector<8x142xbf16>, vector<8x142xbf16>, vector<8x142xbf16>, vector<8x142xbf16>, vector<8x142xbf16>, vector<8x142xbf16>, vector<8x142xbf16>, vector<8x142xbf16>, vector<8x142xbf16> -> vector<120x142xbf16>
    %cst_34 = arith.constant dense<0.000000e+00> : vector<16x142xf32>
    %86 = tpu.matmul %63, %85, %cst_34 {dimension_numbers = #tpu.dot_dimension_numbers<[1], [0], [0], [1], [0, 0, 1, 1], [], []>} : vector<16x120xbf16>, vector<120x142xbf16>, vector<16x142xf32> -> vector<16x142xf32>
    %87 = vector.broadcast %66 : vector<1x142xf32> to vector<16x142xf32>
    %88 = arith.mulf %86, %87 : vector<16x142xf32>
    %cst_35 = arith.constant dense<0.000000e+00> : vector<16xf32>
    %89 = vector.multi_reduction <add>, %88, %cst_35 [1] : vector<16x142xf32> to vector<16xf32>
    %90 = vector.shape_cast %89 : vector<16xf32> to vector<16x1xf32>
    %91 = arith.mulf %88, %88 : vector<16x142xf32>
    %cst_36 = arith.constant dense<0.000000e+00> : vector<16xf32>
    %92 = vector.multi_reduction <add>, %91, %cst_36 [1] : vector<16x142xf32> to vector<16xf32>
    %93 = vector.shape_cast %92 : vector<16xf32> to vector<16x1xf32>
    %cst_37 = arith.constant 6.400000e+01 : f32
    %94 = vector.broadcast %cst_37 : f32 to vector<16x1xf32>
    %95 = arith.divf %90, %94 : vector<16x1xf32>
    %cst_38 = arith.constant 6.400000e+01 : f32
    %96 = vector.broadcast %cst_38 : f32 to vector<16x1xf32>
    %97 = arith.divf %93, %96 : vector<16x1xf32>
    %98 = arith.mulf %95, %95 : vector<16x1xf32>
    %99 = arith.subf %97, %98 : vector<16x1xf32>
    %cst_39 = arith.constant 0.000000e+00 : f32
    %100 = vector.broadcast %cst_39 : f32 to vector<16x1xf32>
    %101 = arith.maximumf %99, %100 : vector<16x1xf32>
    %cst_40 = arith.constant 9.99999974E-6 : f32
    %102 = vector.broadcast %cst_40 : f32 to vector<16x1xf32>
    %103 = arith.addf %101, %102 : vector<16x1xf32>
    %104 = math.rsqrt %103 : vector<16x1xf32>
    %105 = arith.mulf %64, %104 : vector<16x1xf32>
    %106 = arith.mulf %95, %105 : vector<16x1xf32>
    %107 = arith.subf %65, %106 : vector<16x1xf32>
    %108 = vector.broadcast %105 : vector<16x1xf32> to vector<16x142xf32>
    %109 = arith.mulf %86, %108 : vector<16x142xf32>
    %110 = vector.broadcast %107 : vector<16x1xf32> to vector<16x142xf32>
    %111 = arith.addf %109, %110 : vector<16x142xf32>
    %cst_41 = arith.constant 0.000000e+00 : f32
    %112 = vector.broadcast %cst_41 : f32 to vector<16x142xf32>
    %113 = arith.maximumf %111, %112 : vector<16x142xf32>
    %114 = vector.broadcast %67 : vector<1x142xf32> to vector<16x142xf32>
    %115 = arith.mulf %113, %114 : vector<16x142xf32>
    %cst_42 = arith.constant 0.000000e+00 : f32
    %116 = vector.broadcast %cst_42 : f32 to vector<16x2xf32>
    %117 = vector.extract_strided_slice %115 {offsets = [0, 2], sizes = [16, 140], strides = [1, 1]} : vector<16x142xf32> to vector<16x140xf32>
    %118 = tpu.concatenate %117, %116 in 1 : vector<16x140xf32>, vector<16x2xf32> -> vector<16x142xf32>
    %119 = vector.extract_strided_slice %115 {offsets = [0, 0], sizes = [16, 140], strides = [1, 1]} : vector<16x142xf32> to vector<16x140xf32>
    %120 = tpu.concatenate %116, %119 in 1 : vector<16x2xf32>, vector<16x140xf32> -> vector<16x142xf32>
    %121 = arith.maximumf %115, %118 : vector<16x142xf32>
    %122 = arith.maximumf %121, %120 : vector<16x142xf32>
    %123 = arith.truncf %122 : vector<16x142xf32> to vector<16x142xbf16>
    %cst_43 = arith.constant dense<0.000000e+00> : vector<16x60xf32>
    %124 = tpu.matmul %123, %68, %cst_43 {dimension_numbers = #tpu.dot_dimension_numbers<[1], [0], [0], [1], [0, 0, 1, 1], [], []>} : vector<16x142xbf16>, vector<142x60xbf16>, vector<16x60xf32> -> vector<16x60xf32>
    %c0_44 = arith.constant 0 : index
    %c0_45 = arith.constant 0 : index
    %125 = vector.load %arg13[%c0_44, %c0_45] : memref<32x240xbf16, #tpu.memory_space<vmem>>, vector<32x240xbf16>
    %c0_46 = arith.constant 0 : index
    %c0_47 = arith.constant 0 : index
    %126 = vector.load %arg14[%c0_46, %c0_47] : memref<32x1xf32, #tpu.memory_space<vmem>>, vector<32x1xf32>
    %c0_48 = arith.constant 0 : index
    %c0_49 = arith.constant 0 : index
    %127 = vector.load %arg15[%c0_48, %c0_49] : memref<32x1xf32, #tpu.memory_space<vmem>>, vector<32x1xf32>
    %c0_50 = arith.constant 0 : index
    %c0_51 = arith.constant 0 : index
    %128 = vector.load %arg16[%c0_50, %c0_51] : memref<1x46xf32, #tpu.memory_space<vmem>>, vector<1x46xf32>
    %c0_52 = arith.constant 0 : index
    %c0_53 = arith.constant 0 : index
    %129 = vector.load %arg17[%c0_52, %c0_53] : memref<1x46xf32, #tpu.memory_space<vmem>>, vector<1x46xf32>
    %c0_54 = arith.constant 0 : index
    %c0_55 = arith.constant 0 : index
    %130 = vector.load %arg18[%c0_54, %c0_55] : memref<46x2xbf16, #tpu.memory_space<vmem>>, vector<46x2xbf16>
    %131 = arith.truncf %124 : vector<16x60xf32> to vector<16x60xbf16>
    %132 = vector.extract_strided_slice %131 {offsets = [0, 0], sizes = [16, 46], strides = [1, 1]} : vector<16x60xbf16> to vector<16x46xbf16>
    %133 = vector.extract_strided_slice %131 {offsets = [0, 1], sizes = [16, 46], strides = [1, 1]} : vector<16x60xbf16> to vector<16x46xbf16>
    %134 = vector.extract_strided_slice %131 {offsets = [0, 2], sizes = [16, 46], strides = [1, 1]} : vector<16x60xbf16> to vector<16x46xbf16>
    %135 = vector.extract_strided_slice %131 {offsets = [0, 3], sizes = [16, 46], strides = [1, 1]} : vector<16x60xbf16> to vector<16x46xbf16>
    %136 = vector.extract_strided_slice %131 {offsets = [0, 4], sizes = [16, 46], strides = [1, 1]} : vector<16x60xbf16> to vector<16x46xbf16>
    %137 = vector.extract_strided_slice %131 {offsets = [0, 5], sizes = [16, 46], strides = [1, 1]} : vector<16x60xbf16> to vector<16x46xbf16>
    %138 = vector.extract_strided_slice %131 {offsets = [0, 6], sizes = [16, 46], strides = [1, 1]} : vector<16x60xbf16> to vector<16x46xbf16>
    %139 = vector.extract_strided_slice %131 {offsets = [0, 7], sizes = [16, 46], strides = [1, 1]} : vector<16x60xbf16> to vector<16x46xbf16>
    %140 = vector.extract_strided_slice %131 {offsets = [0, 8], sizes = [16, 46], strides = [1, 1]} : vector<16x60xbf16> to vector<16x46xbf16>
    %141 = vector.extract_strided_slice %131 {offsets = [0, 9], sizes = [16, 46], strides = [1, 1]} : vector<16x60xbf16> to vector<16x46xbf16>
    %142 = vector.extract_strided_slice %131 {offsets = [0, 10], sizes = [16, 46], strides = [1, 1]} : vector<16x60xbf16> to vector<16x46xbf16>
    %143 = vector.extract_strided_slice %131 {offsets = [0, 11], sizes = [16, 46], strides = [1, 1]} : vector<16x60xbf16> to vector<16x46xbf16>
    %144 = vector.extract_strided_slice %131 {offsets = [0, 12], sizes = [16, 46], strides = [1, 1]} : vector<16x60xbf16> to vector<16x46xbf16>
    %145 = vector.extract_strided_slice %131 {offsets = [0, 13], sizes = [16, 46], strides = [1, 1]} : vector<16x60xbf16> to vector<16x46xbf16>
    %146 = vector.extract_strided_slice %131 {offsets = [0, 14], sizes = [16, 46], strides = [1, 1]} : vector<16x60xbf16> to vector<16x46xbf16>
    %147 = tpu.concatenate %132, %133, %134, %135, %136, %137, %138, %139, %140, %141, %142, %143, %144, %145, %146 in 0 : vector<16x46xbf16>, vector<16x46xbf16>, vector<16x46xbf16>, vector<16x46xbf16>, vector<16x46xbf16>, vector<16x46xbf16>, vector<16x46xbf16>, vector<16x46xbf16>, vector<16x46xbf16>, vector<16x46xbf16>, vector<16x46xbf16>, vector<16x46xbf16>, vector<16x46xbf16>, vector<16x46xbf16>, vector<16x46xbf16> -> vector<240x46xbf16>
    %cst_56 = arith.constant dense<0.000000e+00> : vector<32x46xf32>
    %148 = tpu.matmul %125, %147, %cst_56 {dimension_numbers = #tpu.dot_dimension_numbers<[1], [0], [0], [1], [0, 0, 1, 1], [], []>} : vector<32x240xbf16>, vector<240x46xbf16>, vector<32x46xf32> -> vector<32x46xf32>
    %149 = vector.broadcast %128 : vector<1x46xf32> to vector<32x46xf32>
    %150 = arith.mulf %148, %149 : vector<32x46xf32>
    %cst_57 = arith.constant dense<0.000000e+00> : vector<32xf32>
    %151 = vector.multi_reduction <add>, %150, %cst_57 [1] : vector<32x46xf32> to vector<32xf32>
    %152 = vector.shape_cast %151 : vector<32xf32> to vector<32x1xf32>
    %153 = arith.mulf %150, %150 : vector<32x46xf32>
    %cst_58 = arith.constant dense<0.000000e+00> : vector<32xf32>
    %154 = vector.multi_reduction <add>, %153, %cst_58 [1] : vector<32x46xf32> to vector<32xf32>
    %155 = vector.shape_cast %154 : vector<32xf32> to vector<32x1xf32>
    %cst_59 = arith.constant 1.600000e+01 : f32
    %156 = vector.broadcast %cst_59 : f32 to vector<32x1xf32>
    %157 = arith.divf %152, %156 : vector<32x1xf32>
    %cst_60 = arith.constant 1.600000e+01 : f32
    %158 = vector.broadcast %cst_60 : f32 to vector<32x1xf32>
    %159 = arith.divf %155, %158 : vector<32x1xf32>
    %160 = arith.mulf %157, %157 : vector<32x1xf32>
    %161 = arith.subf %159, %160 : vector<32x1xf32>
    %cst_61 = arith.constant 0.000000e+00 : f32
    %162 = vector.broadcast %cst_61 : f32 to vector<32x1xf32>
    %163 = arith.maximumf %161, %162 : vector<32x1xf32>
    %cst_62 = arith.constant 9.99999974E-6 : f32
    %164 = vector.broadcast %cst_62 : f32 to vector<32x1xf32>
    %165 = arith.addf %163, %164 : vector<32x1xf32>
    %166 = math.rsqrt %165 : vector<32x1xf32>
    %167 = arith.mulf %126, %166 : vector<32x1xf32>
    %168 = arith.mulf %157, %167 : vector<32x1xf32>
    %169 = arith.subf %127, %168 : vector<32x1xf32>
    %170 = vector.broadcast %167 : vector<32x1xf32> to vector<32x46xf32>
    %171 = arith.mulf %148, %170 : vector<32x46xf32>
    %172 = vector.broadcast %169 : vector<32x1xf32> to vector<32x46xf32>
    %173 = arith.addf %171, %172 : vector<32x46xf32>
    %cst_63 = arith.constant 0.000000e+00 : f32
    %174 = vector.broadcast %cst_63 : f32 to vector<32x46xf32>
    %175 = arith.maximumf %173, %174 : vector<32x46xf32>
    %176 = vector.broadcast %129 : vector<1x46xf32> to vector<32x46xf32>
    %177 = arith.mulf %175, %176 : vector<32x46xf32>
    %cst_64 = arith.constant 0.000000e+00 : f32
    %178 = vector.broadcast %cst_64 : f32 to vector<32x2xf32>
    %179 = vector.extract_strided_slice %177 {offsets = [0, 2], sizes = [32, 44], strides = [1, 1]} : vector<32x46xf32> to vector<32x44xf32>
    %180 = tpu.concatenate %179, %178 in 1 : vector<32x44xf32>, vector<32x2xf32> -> vector<32x46xf32>
    %181 = vector.extract_strided_slice %177 {offsets = [0, 0], sizes = [32, 44], strides = [1, 1]} : vector<32x46xf32> to vector<32x44xf32>
    %182 = tpu.concatenate %178, %181 in 1 : vector<32x2xf32>, vector<32x44xf32> -> vector<32x46xf32>
    %183 = arith.maximumf %177, %180 : vector<32x46xf32>
    %184 = arith.maximumf %183, %182 : vector<32x46xf32>
    %185 = arith.truncf %184 : vector<32x46xf32> to vector<32x46xbf16>
    %cst_65 = arith.constant dense<0.000000e+00> : vector<32x2xf32>
    %186 = tpu.matmul %185, %130, %cst_65 {dimension_numbers = #tpu.dot_dimension_numbers<[1], [0], [0], [1], [0, 0, 1, 1], [], []>} : vector<32x46xbf16>, vector<46x2xbf16>, vector<32x2xf32> -> vector<32x2xf32>
    %cst_66 = arith.constant 2.500000e-01 : f32
    %187 = vector.broadcast %cst_66 : f32 to vector<32x2xf32>
    %188 = arith.mulf %186, %187 : vector<32x2xf32>
    %c0_67 = arith.constant 0 : index
    %c0_68 = arith.constant 0 : index
    %189 = vector.load %arg19[%c0_67, %c0_68] : memref<10x32xbf16, #tpu.memory_space<vmem>>, vector<10x32xbf16>
    %190 = arith.truncf %188 : vector<32x2xf32> to vector<32x2xbf16>
    %cst_69 = arith.constant dense<0.000000e+00> : vector<10x2xf32>
    %191 = tpu.matmul %189, %190, %cst_69 {dimension_numbers = #tpu.dot_dimension_numbers<[1], [0], [0], [1], [0, 0, 1, 1], [], []>} : vector<10x32xbf16>, vector<32x2xbf16>, vector<10x2xf32> -> vector<10x2xf32>
    %c0_70 = arith.constant 0 : index
    %c0_71 = arith.constant 0 : index
    %192 = vector.load %arg20[%c0_70, %c0_71] : memref<10x1xf32, #tpu.memory_space<vmem>>, vector<10x1xf32>
    %193 = vector.broadcast %192 : vector<10x1xf32> to vector<10x2xf32>
    %194 = arith.addf %191, %193 : vector<10x2xf32>
    %c0_72 = arith.constant 0 : index
    %c0_73 = arith.constant 0 : index
    %195 = vector.load %arg21[%c0_72, %c0_73] : memref<10x2xf32, #tpu.memory_space<vmem>>, vector<10x2xf32>
    tpu.vector_store %arg21[%c0_72, %c0_73], %194 {strides = array<i32>} : memref<10x2xf32, #tpu.memory_space<vmem>>, vector<10x2xf32>,
    return
  }
}

</mosaic_0001>

<llo_original>
// kernel: conv1dnet_forward.1
$region0: #{conv1dnet_forward.1}
  #allocation0 [shape = 'u32[]', space=smem, size = 0x4, offset = 0x4, fixed_abs, tag = 'smem constant byte address 0x4 - core index']
  #allocation1 [shape = 'u32[144,128]{1,0:T(1,128)}', space=vmem, size = 0x12000, scoped, tag = 'internal scratch']
  %s0 = inlined_call_operand.vmem [shape: f32[1,540], index: 0, kind: input, shape index: {}]
  %s1 = inlined_call_operand.vmem [shape: bf16[8,15], index: 1, kind: input, shape index: {}]
  %s2 = inlined_call_operand.vmem [shape: f32[8,1], index: 2, kind: input, shape index: {}]
  %s3 = inlined_call_operand.vmem [shape: f32[8,1], index: 3, kind: input, shape index: {}]
  %s4 = inlined_call_operand.vmem [shape: f32[1,526], index: 4, kind: input, shape index: {}]
  %s5 = inlined_call_operand.vmem [shape: f32[1,526], index: 5, kind: input, shape index: {}]
  %s6 = inlined_call_operand.vmem [shape: bf16[526,156], index: 6, kind: input, shape index: {}]
  %s7 = inlined_call_operand.vmem [shape: bf16[16,120], index: 7, kind: input, shape index: {}]
  %s8 = inlined_call_operand.vmem [shape: f32[16,1], index: 8, kind: input, shape index: {}]
  %s9 = inlined_call_operand.vmem [shape: f32[16,1], index: 9, kind: input, shape index: {}]
  %s10 = inlined_call_operand.vmem [shape: f32[1,142], index: 10, kind: input, shape index: {}]
  %s11 = inlined_call_operand.vmem [shape: f32[1,142], index: 11, kind: input, shape index: {}]
  %s12 = inlined_call_operand.vmem [shape: bf16[142,60], index: 12, kind: input, shape index: {}]
  %s13 = inlined_call_operand.vmem [shape: bf16[32,240], index: 13, kind: input, shape index: {}]
  %s14 = inlined_call_operand.vmem [shape: f32[32,1], index: 14, kind: input, shape index: {}]
  %s15 = inlined_call_operand.vmem [shape: f32[32,1], index: 15, kind: input, shape index: {}]
  %s16 = inlined_call_operand.vmem [shape: f32[1,46], index: 16, kind: input, shape index: {}]
  %s17 = inlined_call_operand.vmem [shape: f32[1,46], index: 17, kind: input, shape index: {}]
  %s18 = inlined_call_operand.vmem [shape: bf16[46,2], index: 18, kind: input, shape index: {}]
  %s19 = inlined_call_operand.vmem [shape: bf16[10,32], index: 19, kind: input, shape index: {}]
  %s20 = inlined_call_operand.vmem [shape: f32[10,1], index: 20, kind: input, shape index: {}]
  %s21 = inlined_call_operand.vmem [shape: f32[10,2], index: 21, kind: output, shape index: {}]
  %s22 = sld [smem:[#allocation0]]
  $region94: #{conv1dnet_forward.1} parent=0
    _
  %s24 = ssub.s32 1, %s22
  %s25 = scalar_select 0, %s24, %s22
  // Predicated region
  $region2: #{conv1dnet_forward.1} parent=0 // pred_check
    _
  $region3: #{conv1dnet_forward.1} parent=0 // pred_check_branch
    %27 = sbr.rel (0) target = $region5
  $region4: #{conv1dnet_forward.1} parent=0 // pred_region
    _
  $region5: #{conv1dnet_forward.1} parent=0 // pred_fallthru
    _
  // Predicated region
  $region6: #{conv1dnet_forward.1} parent=0 // pred_check
    _
  $region7: #{conv1dnet_forward.1} parent=0 // pred_check_branch
    %29 = sbr.rel (0) target = $region9
  $region8: #{conv1dnet_forward.1} parent=0 // pred_region
    _
  $region9: #{conv1dnet_forward.1} parent=0 // pred_fallthru
    _
  // Predicated region
  $region10: #{conv1dnet_forward.1} parent=0 // pred_check
    _
  $region11: #{conv1dnet_forward.1} parent=0 // pred_check_branch
    %31 = sbr.rel (0) target = $region13
  $region12: #{conv1dnet_forward.1} parent=0 // pred_region
    _
  $region13: #{conv1dnet_forward.1} parent=0 // pred_fallthru
    _
  // Predicated region
  $region14: #{conv1dnet_forward.1} parent=0 // pred_check
    _
  $region15: #{conv1dnet_forward.1} parent=0 // pred_check_branch
    %33 = sbr.rel (0) target = $region17
  $region16: #{conv1dnet_forward.1} parent=0 // pred_region
    _
  $region17: #{conv1dnet_forward.1} parent=0 // pred_fallthru
    _
  // Predicated region
  $region18: #{conv1dnet_forward.1} parent=0 // pred_check
    _
  $region19: #{conv1dnet_forward.1} parent=0 // pred_check_branch
    %35 = sbr.rel (0) target = $region21
  $region20: #{conv1dnet_forward.1} parent=0 // pred_region
    _
  $region21: #{conv1dnet_forward.1} parent=0 // pred_fallthru
    _
  // Predicated region
  $region22: #{conv1dnet_forward.1} parent=0 // pred_check
    _
  $region23: #{conv1dnet_forward.1} parent=0 // pred_check_branch
    %37 = sbr.rel (0) target = $region25
  $region24: #{conv1dnet_forward.1} parent=0 // pred_region
    _
  $region25: #{conv1dnet_forward.1} parent=0 // pred_fallthru
    _
  // Predicated region
  $region26: #{conv1dnet_forward.1} parent=0 // pred_check
    _
  $region27: #{conv1dnet_forward.1} parent=0 // pred_check_branch
    %39 = sbr.rel (0) target = $region29
  $region28: #{conv1dnet_forward.1} parent=0 // pred_region
    _
  $region29: #{conv1dnet_forward.1} parent=0 // pred_fallthru
    _
  // Predicated region
  $region30: #{conv1dnet_forward.1} parent=0 // pred_check
    _
  $region31: #{conv1dnet_forward.1} parent=0 // pred_check_branch
    %41 = sbr.rel (0) target = $region33
  $region32: #{conv1dnet_forward.1} parent=0 // pred_region
    _
  $region33: #{conv1dnet_forward.1} parent=0 // pred_fallthru
    _
  // Predicated region
  $region34: #{conv1dnet_forward.1} parent=0 // pred_check
    _
  $region35: #{conv1dnet_forward.1} parent=0 // pred_check_branch
    %43 = sbr.rel (0) target = $region37
  $region36: #{conv1dnet_forward.1} parent=0 // pred_region
    _
  $region37: #{conv1dnet_forward.1} parent=0 // pred_fallthru
    _
  // Predicated region
  $region38: #{conv1dnet_forward.1} parent=0 // pred_check
    _
  $region39: #{conv1dnet_forward.1} parent=0 // pred_check_branch
    %45 = sbr.rel (0) target = $region41
  $region40: #{conv1dnet_forward.1} parent=0 // pred_region
    _
  $region41: #{conv1dnet_forward.1} parent=0 // pred_fallthru
    _
  // Predicated region
  $region42: #{conv1dnet_forward.1} parent=0 // pred_check
    _
  $region43: #{conv1dnet_forward.1} parent=0 // pred_check_branch
    %47 = sbr.rel (0) target = $region45
  $region44: #{conv1dnet_forward.1} parent=0 // pred_region
    _
  $region45: #{conv1dnet_forward.1} parent=0 // pred_fallthru
    _
  // Predicated region
  $region46: #{conv1dnet_forward.1} parent=0 // pred_check
    _
  $region47: #{conv1dnet_forward.1} parent=0 // pred_check_branch
    %49 = sbr.rel (0) target = $region49
  $region48: #{conv1dnet_forward.1} parent=0 // pred_region
    _
  $region49: #{conv1dnet_forward.1} parent=0 // pred_fallthru
    _
  // Predicated region
  $region50: #{conv1dnet_forward.1} parent=0 // pred_check
    _
  $region51: #{conv1dnet_forward.1} parent=0 // pred_check_branch
    %51 = sbr.rel (0) target = $region53
  $region52: #{conv1dnet_forward.1} parent=0 // pred_region
    _
  $region53: #{conv1dnet_forward.1} parent=0 // pred_fallthru
    _
  // Predicated region
  $region54: #{conv1dnet_forward.1} parent=0 // pred_check
    _
  $region55: #{conv1dnet_forward.1} parent=0 // pred_check_branch
    %53 = sbr.rel (0) target = $region57
  $region56: #{conv1dnet_forward.1} parent=0 // pred_region
    _
  $region57: #{conv1dnet_forward.1} parent=0 // pred_fallthru
    _
  // Predicated region
  $region58: #{conv1dnet_forward.1} parent=0 // pred_check
    _
  $region59: #{conv1dnet_forward.1} parent=0 // pred_check_branch
    %55 = sbr.rel (0) target = $region61
  $region60: #{conv1dnet_forward.1} parent=0 // pred_region
    _
  $region61: #{conv1dnet_forward.1} parent=0 // pred_fallthru
    _
  // Predicated region
  $region62: #{conv1dnet_forward.1} parent=0 // pred_check
    _
  $region63: #{conv1dnet_forward.1} parent=0 // pred_check_branch
    %57 = sbr.rel (0) target = $region65
  $region64: #{conv1dnet_forward.1} parent=0 // pred_region
    _
  $region65: #{conv1dnet_forward.1} parent=0 // pred_fallthru
    _
  // Predicated region
  $region66: #{conv1dnet_forward.1} parent=0 // pred_check
    _
  $region67: #{conv1dnet_forward.1} parent=0 // pred_check_branch
    %59 = sbr.rel (0) target = $region69
  $region68: #{conv1dnet_forward.1} parent=0 // pred_region
    _
  $region69: #{conv1dnet_forward.1} parent=0 // pred_fallthru
    _
  // Predicated region
  $region70: #{conv1dnet_forward.1} parent=0 // pred_check
    _
  $region71: #{conv1dnet_forward.1} parent=0 // pred_check_branch
    %61 = sbr.rel (0) target = $region73
  $region72: #{conv1dnet_forward.1} parent=0 // pred_region
    _
  $region73: #{conv1dnet_forward.1} parent=0 // pred_fallthru
    _
  // Predicated region
  $region74: #{conv1dnet_forward.1} parent=0 // pred_check
    _
  $region75: #{conv1dnet_forward.1} parent=0 // pred_check_branch
    %63 = sbr.rel (0) target = $region77
  $region76: #{conv1dnet_forward.1} parent=0 // pred_region
    _
  $region77: #{conv1dnet_forward.1} parent=0 // pred_fallthru
    _
  // Predicated region
  $region78: #{conv1dnet_forward.1} parent=0 // pred_check
    _
  $region79: #{conv1dnet_forward.1} parent=0 // pred_check_branch
    %65 = sbr.rel (0) target = $region81
  $region80: #{conv1dnet_forward.1} parent=0 // pred_region
    _
  $region81: #{conv1dnet_forward.1} parent=0 // pred_fallthru
    _
  // Predicated region
  $region82: #{conv1dnet_forward.1} parent=0 // pred_check
    _
  $region83: #{conv1dnet_forward.1} parent=0 // pred_check_branch
    %67 = sbr.rel (0) target = $region85
  $region84: #{conv1dnet_forward.1} parent=0 // pred_region
    _
  $region85: #{conv1dnet_forward.1} parent=0 // pred_fallthru
    _
  %v69 = vld [vmem:[%s0] sm:$0x1f]
  %v70 = vld [vmem:[%s1] sm:$0xf]
  %v71 = vld [vmem:[%s2] sm:$0xff]
  %v72 = vld [vmem:[%s3] sm:$0xff]
  %v73 = vld [vmem:[%s4] sm:$0x1f]
  %v74 = vld [vmem:[%s5] sm:$0x1f]
  %v75 = vld [vmem:[%s6] sm:$0xff]
  %v76 = vld [vmem:[%s6 + $0x8] sm:$0xff]
  %v77 = vld [vmem:[%s6 + $0x10] sm:$0xff]
  %v78 = vld [vmem:[%s6 + $0x18] sm:$0xff]
  %v79 = vld [vmem:[%s6 + $0x20] sm:$0xff]
  %v80 = vld [vmem:[%s6 + $0x28] sm:$0xff]
  %v81 = vld [vmem:[%s6 + $0x30] sm:$0xff]
  %v82 = vld [vmem:[%s6 + $0x38] sm:$0xff]
  %v83 = vld [vmem:[%s6 + $0x40] sm:$0xff]
  %v84 = vld [vmem:[%s6 + $0x48] sm:$0xff]
  %v85 = vld [vmem:[%s6 + $0x50] sm:$0xff]
  %v86 = vld [vmem:[%s6 + $0x58] sm:$0xff]
  %v87 = vld [vmem:[%s6 + $0x60] sm:$0xff]
  %v88 = vld [vmem:[%s6 + $0x68] sm:$0xff]
  %v89 = vld [vmem:[%s6 + $0x70] sm:$0xff]
  %v90 = vld [vmem:[%s6 + $0x78] sm:$0xff]
  %v91 = vld [vmem:[%s6 + $0x80] sm:$0xff]
  %v92 = vld [vmem:[%s6 + $0x88] sm:$0xff]
  %v93 = vld [vmem:[%s6 + $0x90] sm:$0xff]
  %v94 = vld [vmem:[%s6 + $0x98] sm:$0xff]
  %v95 = vld [vmem:[%s6 + $0xa0] sm:$0xff]
  %v96 = vld [vmem:[%s6 + $0xa8] sm:$0xff]
  %v97 = vld [vmem:[%s6 + $0xb0] sm:$0xff]
  %v98 = vld [vmem:[%s6 + $0xb8] sm:$0xff]
  %v99 = vld [vmem:[%s6 + $0xc0] sm:$0xff]
  %v100 = vld [vmem:[%s6 + $0xc8] sm:$0xff]
  %v101 = vld [vmem:[%s6 + $0xd0] sm:$0xff]
  %v102 = vld [vmem:[%s6 + $0xd8] sm:$0xff]
  %v103 = vld [vmem:[%s6 + $0xe0] sm:$0xff]
  %v104 = vld [vmem:[%s6 + $0xe8] sm:$0xff]
  %v105 = vld [vmem:[%s6 + $0xf0] sm:$0xff]
  %v106 = vld [vmem:[%s6 + $0xf8] sm:$0xff]
  %v107 = vld [vmem:[%s6 + $0x100] sm:$0xff]
  %v108 = vld [vmem:[%s6 + $0x108] sm:$0xff]
  %v109 = vld [vmem:[%s6 + $0x110] sm:$0xff]
  %v110 = vld [vmem:[%s6 + $0x118] sm:$0xff]
  %v111 = vld [vmem:[%s6 + $0x120] sm:$0xff]
  %v112 = vld [vmem:[%s6 + $0x128] sm:$0xff]
  %v113 = vld [vmem:[%s6 + $0x130] sm:$0xff]
  %v114 = vld [vmem:[%s6 + $0x138] sm:$0xff]
  %v115 = vld [vmem:[%s6 + $0x140] sm:$0xff]
  %v116 = vld [vmem:[%s6 + $0x148] sm:$0xff]
  %v117 = vld [vmem:[%s6 + $0x150] sm:$0xff]
  %v118 = vld [vmem:[%s6 + $0x158] sm:$0xff]
  %v119 = vld [vmem:[%s6 + $0x160] sm:$0xff]
  %v120 = vld [vmem:[%s6 + $0x168] sm:$0xff]
  %v121 = vld [vmem:[%s6 + $0x170] sm:$0xff]
  %v122 = vld [vmem:[%s6 + $0x178] sm:$0xff]
  %v123 = vld [vmem:[%s6 + $0x180] sm:$0xff]
  %v124 = vld [vmem:[%s6 + $0x188] sm:$0xff]
  %v125 = vld [vmem:[%s6 + $0x190] sm:$0xff]
  %v126 = vld [vmem:[%s6 + $0x198] sm:$0xff]
  %v127 = vld [vmem:[%s6 + $0x1a0] sm:$0xff]
  %v128 = vld [vmem:[%s6 + $0x1a8] sm:$0xff]
  %v129 = vld [vmem:[%s6 + $0x1b0] sm:$0xff]
  %v130 = vld [vmem:[%s6 + $0x1b8] sm:$0xff]
  %v131 = vld [vmem:[%s6 + $0x1c0] sm:$0xff]
  %v132 = vld [vmem:[%s6 + $0x1c8] sm:$0xff]
  %v133 = vld [vmem:[%s6 + $0x1d0] sm:$0xff]
  %v134 = vld [vmem:[%s6 + $0x1d8] sm:$0xff]
  %v135 = vld [vmem:[%s6 + $0x1e0] sm:$0xff]
  %v136 = vld [vmem:[%s6 + $0x1e8] sm:$0xff]
  %v137 = vld [vmem:[%s6 + $0x1f0] sm:$0xff]
  %v138 = vld [vmem:[%s6 + $0x1f8] sm:$0xff]
  %v139 = vld [vmem:[%s6 + $0x200] sm:$0xff]
  %v140 = vld [vmem:[%s6 + $0x208] sm:$0x77]
  %v142 = vlaneseq
  %v143 = vshrl.u32 %v142, 7
  %v144 = vsub.s32 0, %v143
  %v145 = vrot.slane %v69, %v144
  %v146 = vlaneseq
  %v147 = vshrl.u32 %v146, 7
  %v148 = vsub.s32 1, %v147
  %v149 = vrot.slane %v69, %v148
  %v150 = vlaneseq
  %v151 = vshrl.u32 %v150, 7
  %v152 = vsub.s32 2, %v151
  %v153 = vrot.slane %v69, %v152
  %v154 = vlaneseq
  %v155 = vshrl.u32 %v154, 7
  %v156 = vsub.s32 3, %v155
  %v157 = vrot.slane %v69, %v156
  %v158 = vlaneseq
  %v159 = vshrl.u32 %v158, 7
  %v160 = vsub.s32 4, %v159
  %v161 = vrot.slane %v69, %v160
  %167 = vrot.lane.b32.xlu0 %v145, 127
  %v168 = vpop.permute.xlu0 %167
  %169 = vrot.lane.b32.xlu0 %v149, 127
  %v170 = vpop.permute.xlu0 %169
  %171 = vrot.lane.b32.xlu0 %v153, 127
  %v172 = vpop.permute.xlu0 %171
  %173 = vrot.lane.b32.xlu0 %v157, 127
  %v174 = vpop.permute.xlu0 %173
  %175 = vrot.lane.b32.xlu0 %v161, 127
  %v176 = vpop.permute.xlu0 %175
  %vm177 = vcmask 1039360
  %v178 = vsel %vm177, %v168, %v170
  %v179 = vsel %vm177, %v170, %v172
  %v180 = vsel %vm177, %v172, %v174
  %v181 = vsel %vm177, %v174, %v176
  %187 = vrot.lane.b32.xlu0 %v145, 126
  %v188 = vpop.permute.xlu0 %187
  %189 = vrot.lane.b32.xlu0 %v149, 126
  %v190 = vpop.permute.xlu0 %189
  %191 = vrot.lane.b32.xlu0 %v153, 126
  %v192 = vpop.permute.xlu0 %191
  %193 = vrot.lane.b32.xlu0 %v157, 126
  %v194 = vpop.permute.xlu0 %193
  %195 = vrot.lane.b32.xlu0 %v161, 126
  %v196 = vpop.permute.xlu0 %195
  %vm197 = vcmask 1031168
  %v198 = vsel %vm197, %v188, %v190
  %v199 = vsel %vm197, %v190, %v192
  %v200 = vsel %vm197, %v192, %v194
  %v201 = vsel %vm197, %v194, %v196
  %207 = vrot.lane.b32.xlu0 %v145, 125
  %v208 = vpop.permute.xlu0 %207
  %209 = vrot.lane.b32.xlu0 %v149, 125
  %v210 = vpop.permute.xlu0 %209
  %211 = vrot.lane.b32.xlu0 %v153, 125
  %v212 = vpop.permute.xlu0 %211
  %213 = vrot.lane.b32.xlu0 %v157, 125
  %v214 = vpop.permute.xlu0 %213
  %215 = vrot.lane.b32.xlu0 %v161, 125
  %v216 = vpop.permute.xlu0 %215
  %vm217 = vcmask 1022976
  %v218 = vsel %vm217, %v208, %v210
  %v219 = vsel %vm217, %v210, %v212
  %v220 = vsel %vm217, %v212, %v214
  %v221 = vsel %vm217, %v214, %v216
  %227 = vrot.lane.b32.xlu0 %v145, 124
  %v228 = vpop.permute.xlu0 %227
  %229 = vrot.lane.b32.xlu0 %v149, 124
  %v230 = vpop.permute.xlu0 %229
  %231 = vrot.lane.b32.xlu0 %v153, 124
  %v232 = vpop.permute.xlu0 %231
  %233 = vrot.lane.b32.xlu0 %v157, 124
  %v234 = vpop.permute.xlu0 %233
  %235 = vrot.lane.b32.xlu0 %v161, 124
  %v236 = vpop.permute.xlu0 %235
  %vm237 = vcmask 1014784
  %v238 = vsel %vm237, %v228, %v230
  %v239 = vsel %vm237, %v230, %v232
  %v240 = vsel %vm237, %v232, %v234
  %v241 = vsel %vm237, %v234, %v236
  %247 = vrot.lane.b32.xlu0 %v145, 123
  %v248 = vpop.permute.xlu0 %247
  %249 = vrot.lane.b32.xlu0 %v149, 123
  %v250 = vpop.permute.xlu0 %249
  %251 = vrot.lane.b32.xlu0 %v153, 123
  %v252 = vpop.permute.xlu0 %251
  %253 = vrot.lane.b32.xlu0 %v157, 123
  %v254 = vpop.permute.xlu0 %253
  %255 = vrot.lane.b32.xlu0 %v161, 123
  %v256 = vpop.permute.xlu0 %255
  %vm257 = vcmask 1006592
  %v258 = vsel %vm257, %v248, %v250
  %v259 = vsel %vm257, %v250, %v252
  %v260 = vsel %vm257, %v252, %v254
  %v261 = vsel %vm257, %v254, %v256
  %267 = vrot.lane.b32.xlu0 %v145, 122
  %v268 = vpop.permute.xlu0 %267
  %269 = vrot.lane.b32.xlu0 %v149, 122
  %v270 = vpop.permute.xlu0 %269
  %271 = vrot.lane.b32.xlu0 %v153, 122
  %v272 = vpop.permute.xlu0 %271
  %273 = vrot.lane.b32.xlu0 %v157, 122
  %v274 = vpop.permute.xlu0 %273
  %275 = vrot.lane.b32.xlu0 %v161, 122
  %v276 = vpop.permute.xlu0 %275
  %vm277 = vcmask 998400
  %v278 = vsel %vm277, %v268, %v270
  %v279 = vsel %vm277, %v270, %v272
  %v280 = vsel %vm277, %v272, %v274
  %v281 = vsel %vm277, %v274, %v276
  %287 = vrot.lane.b32.xlu0 %v145, 121
  %v288 = vpop.permute.xlu0 %287
  %289 = vrot.lane.b32.xlu0 %v149, 121
  %v290 = vpop.permute.xlu0 %289
  %291 = vrot.lane.b32.xlu0 %v153, 121
  %v292 = vpop.permute.xlu0 %291
  %293 = vrot.lane.b32.xlu0 %v157, 121
  %v294 = vpop.permute.xlu0 %293
  %295 = vrot.lane.b32.xlu0 %v161, 121
  %v296 = vpop.permute.xlu0 %295
  %vm297 = vcmask 990208
  %v298 = vsel %vm297, %v288, %v290
  %v299 = vsel %vm297, %v290, %v292
  %v300 = vsel %vm297, %v292, %v294
  %v301 = vsel %vm297, %v294, %v296
  %307 = vrot.lane.b32.xlu0 %v145, 120
  %v308 = vpop.permute.xlu0 %307
  %309 = vrot.lane.b32.xlu0 %v149, 120
  %v310 = vpop.permute.xlu0 %309
  %311 = vrot.lane.b32.xlu0 %v153, 120
  %v312 = vpop.permute.xlu0 %311
  %313 = vrot.lane.b32.xlu0 %v157, 120
  %v314 = vpop.permute.xlu0 %313
  %315 = vrot.lane.b32.xlu0 %v161, 120
  %v316 = vpop.permute.xlu0 %315
  %vm317 = vcmask 982016
  %v318 = vsel %vm317, %v308, %v310
  %v319 = vsel %vm317, %v310, %v312
  %v320 = vsel %vm317, %v312, %v314
  %v321 = vsel %vm317, %v314, %v316
  %327 = vrot.lane.b32.xlu0 %v145, 119
  %v328 = vpop.permute.xlu0 %327
  %329 = vrot.lane.b32.xlu0 %v149, 119
  %v330 = vpop.permute.xlu0 %329
  %331 = vrot.lane.b32.xlu0 %v153, 119
  %v332 = vpop.permute.xlu0 %331
  %333 = vrot.lane.b32.xlu0 %v157, 119
  %v334 = vpop.permute.xlu0 %333
  %335 = vrot.lane.b32.xlu0 %v161, 119
  %v336 = vpop.permute.xlu0 %335
  %vm337 = vcmask 973824
  %v338 = vsel %vm337, %v328, %v330
  %v339 = vsel %vm337, %v330, %v332
  %v340 = vsel %vm337, %v332, %v334
  %v341 = vsel %vm337, %v334, %v336
  %347 = vrot.lane.b32.xlu0 %v145, 118
  %v348 = vpop.permute.xlu0 %347
  %349 = vrot.lane.b32.xlu0 %v149, 118
  %v350 = vpop.permute.xlu0 %349
  %351 = vrot.lane.b32.xlu0 %v153, 118
  %v352 = vpop.permute.xlu0 %351
  %353 = vrot.lane.b32.xlu0 %v157, 118
  %v354 = vpop.permute.xlu0 %353
  %355 = vrot.lane.b32.xlu0 %v161, 118
  %v356 = vpop.permute.xlu0 %355
  %vm357 = vcmask 965632
  %v358 = vsel %vm357, %v348, %v350
  %v359 = vsel %vm357, %v350, %v352
  %v360 = vsel %vm357, %v352, %v354
  %v361 = vsel %vm357, %v354, %v356
  %367 = vrot.lane.b32.xlu0 %v145, 117
  %v368 = vpop.permute.xlu0 %367
  %369 = vrot.lane.b32.xlu0 %v149, 117
  %v370 = vpop.permute.xlu0 %369
  %371 = vrot.lane.b32.xlu0 %v153, 117
  %v372 = vpop.permute.xlu0 %371
  %373 = vrot.lane.b32.xlu0 %v157, 117
  %v374 = vpop.permute.xlu0 %373
  %375 = vrot.lane.b32.xlu0 %v161, 117
  %v376 = vpop.permute.xlu0 %375
  %vm377 = vcmask 957440
  %v378 = vsel %vm377, %v368, %v370
  %v379 = vsel %vm377, %v370, %v372
  %v380 = vsel %vm377, %v372, %v374
  %v381 = vsel %vm377, %v374, %v376
  %387 = vrot.lane.b32.xlu0 %v145, 116
  %v388 = vpop.permute.xlu0 %387
  %389 = vrot.lane.b32.xlu0 %v149, 116
  %v390 = vpop.permute.xlu0 %389
  %391 = vrot.lane.b32.xlu0 %v153, 116
  %v392 = vpop.permute.xlu0 %391
  %393 = vrot.lane.b32.xlu0 %v157, 116
  %v394 = vpop.permute.xlu0 %393
  %395 = vrot.lane.b32.xlu0 %v161, 116
  %v396 = vpop.permute.xlu0 %395
  %vm397 = vcmask 949248
  %v398 = vsel %vm397, %v388, %v390
  %v399 = vsel %vm397, %v390, %v392
  %v400 = vsel %vm397, %v392, %v394
  %v401 = vsel %vm397, %v394, %v396
  %407 = vrot.lane.b32.xlu0 %v145, 115
  %v408 = vpop.permute.xlu0 %407
  %409 = vrot.lane.b32.xlu0 %v149, 115
  %v410 = vpop.permute.xlu0 %409
  %411 = vrot.lane.b32.xlu0 %v153, 115
  %v412 = vpop.permute.xlu0 %411
  %413 = vrot.lane.b32.xlu0 %v157, 115
  %v414 = vpop.permute.xlu0 %413
  %415 = vrot.lane.b32.xlu0 %v161, 115
  %v416 = vpop.permute.xlu0 %415
  %vm417 = vcmask 941056
  %v418 = vsel %vm417, %v408, %v410
  %v419 = vsel %vm417, %v410, %v412
  %v420 = vsel %vm417, %v412, %v414
  %v421 = vsel %vm417, %v414, %v416
  %427 = vrot.lane.b32.xlu0 %v145, 114
  %v428 = vpop.permute.xlu0 %427
  %429 = vrot.lane.b32.xlu0 %v149, 114
  %v430 = vpop.permute.xlu0 %429
  %431 = vrot.lane.b32.xlu0 %v153, 114
  %v432 = vpop.permute.xlu0 %431
  %433 = vrot.lane.b32.xlu0 %v157, 114
  %v434 = vpop.permute.xlu0 %433
  %435 = vrot.lane.b32.xlu0 %v161, 114
  %v436 = vpop.permute.xlu0 %435
  %vm437 = vcmask 932864
  %v438 = vsel %vm437, %v428, %v430
  %v439 = vsel %vm437, %v430, %v432
  %v440 = vsel %vm437, %v432, %v434
  %v441 = vsel %vm437, %v434, %v436
  %vm447 = vcmask 1040384
  %v448 = vsel %vm447, %v145, %v178
  %v449 = vsel %vm447, %v149, %v179
  %v450 = vsel %vm447, %v153, %v180
  %v451 = vsel %vm447, %v157, %v181
  %v452 = vsel %vm447, %v161, %v176
  %vm453 = vcmask 1041408
  %v454 = vsel %vm453, %v448, %v198
  %v455 = vsel %vm453, %v449, %v199
  %v456 = vsel %vm453, %v450, %v200
  %v457 = vsel %vm453, %v451, %v201
  %v458 = vsel %vm453, %v452, %v196
  %vm459 = vcmask 1042432
  %v460 = vsel %vm459, %v454, %v218
  %v461 = vsel %vm459, %v455, %v219
  %v462 = vsel %vm459, %v456, %v220
  %v463 = vsel %vm459, %v457, %v221
  %v464 = vsel %vm459, %v458, %v216
  %vm465 = vcmask 1043456
  %v466 = vsel %vm465, %v460, %v238
  %v467 = vsel %vm465, %v461, %v239
  %v468 = vsel %vm465, %v462, %v240
  %v469 = vsel %vm465, %v463, %v241
  %v470 = vsel %vm465, %v464, %v236
  %vm471 = vcmask 1044480
  %v472 = vsel %vm471, %v466, %v258
  %v473 = vsel %vm471, %v467, %v259
  %v474 = vsel %vm471, %v468, %v260
  %v475 = vsel %vm471, %v469, %v261
  %v476 = vsel %vm471, %v470, %v256
  %vm477 = vcmask 1045504
  %v478 = vsel %vm477, %v472, %v278
  %v479 = vsel %vm477, %v473, %v279
  %v480 = vsel %vm477, %v474, %v280
  %v481 = vsel %vm477, %v475, %v281
  %v482 = vsel %vm477, %v476, %v276
  %vm483 = vcmask 1046528
  %v484 = vsel %vm483, %v478, %v298
  %v485 = vsel %vm483, %v479, %v299
  %v486 = vsel %vm483, %v480, %v300
  %v487 = vsel %vm483, %v481, %v301
  %v488 = vsel %vm483, %v482, %v296
  %v489 = vsel %vm447, %v318, %v338
  %v490 = vsel %vm447, %v319, %v339
  %v491 = vsel %vm447, %v320, %v340
  %v492 = vsel %vm447, %v321, %v341
  %v493 = vsel %vm447, %v316, %v336
  %v494 = vsel %vm453, %v489, %v358
  %v495 = vsel %vm453, %v490, %v359
  %v496 = vsel %vm453, %v491, %v360
  %v497 = vsel %vm453, %v492, %v361
  %v498 = vsel %vm453, %v493, %v356
  %v499 = vsel %vm459, %v494, %v378
  %v500 = vsel %vm459, %v495, %v379
  %v501 = vsel %vm459, %v496, %v380
  %v502 = vsel %vm459, %v497, %v381
  %v503 = vsel %vm459, %v498, %v376
  %v504 = vsel %vm465, %v499, %v398
  %v505 = vsel %vm465, %v500, %v399
  %v506 = vsel %vm465, %v501, %v400
  %v507 = vsel %vm465, %v502, %v401
  %v508 = vsel %vm465, %v503, %v396
  %v509 = vsel %vm471, %v504, %v418
  %v510 = vsel %vm471, %v505, %v419
  %v511 = vsel %vm471, %v506, %v420
  %v512 = vsel %vm471, %v507, %v421
  %v513 = vsel %vm471, %v508, %v416
  %v514 = vsel %vm477, %v509, %v438
  %v515 = vsel %vm477, %v510, %v439
  %v516 = vsel %vm477, %v511, %v440
  %v517 = vsel %vm477, %v512, %v441
  %v518 = vsel %vm477, %v513, %v436
  %v519 = vpack.c.bf16 %v514, %v484
  %v520 = vpack.c.bf16 %v515, %v485
  %v521 = vpack.c.bf16 %v516, %v486
  %v522 = vpack.c.bf16 %v517, %v487
  %v523 = vpack.c.bf16 %v518, %v488
  %vm524 = vcmask 121856
  %v526 = vsel %vm524, %v70, 0
  %vm528 = vcmask 1047552
  %v529 = vsel %vm483, 4294967295, 65535
  %v530 = vsel %vm528, %v529, 0
  %v532 = vand.u32 %v519, %v530
  %v535 = vand.u32 %v520, %v530
  %v538 = vand.u32 %v521, %v530
  %v541 = vand.u32 %v522, %v530
  %v544 = vand.u32 %v523, %v530
  %546 = vmatprep.subr.bf16.mxu0 %v535
  %547 = vmatpush1.bf16.msra.mxu0 %v532
  %548 = vmatprep.subr.bf16.mxu0 0
  %549 = vmatpush1.bf16.msra.mxu0 0
  %550 = vmatprep.subr.bf16.mxu0 0
  %551 = vmatpush1.bf16.msra.mxu0 0
  %552 = vmatprep.subr.bf16.mxu0 0
  %553 = vmatpush1.bf16.msra.mxu0 0
  %554 = vmatprep.subr.bf16.mxu0 0
  %555 = vmatpush1.bf16.msra.mxu0 0
  %556 = vmatprep.subr.bf16.mxu0 0
  %557 = vmatpush1.bf16.msra.mxu0 0
  %558 = vmatprep.subr.bf16.mxu0 0
  %559 = vmatpush1.bf16.msra.mxu0 0
  %560 = vmatprep.subr.bf16.mxu0 0
  %561 = vmatpush1.bf16.msra.mxu0 0
  %562 = vmatprep.subr.bf16.mxu0 0
  %563 = vmatpush1.bf16.msra.mxu0 0
  %564 = vmatprep.subr.bf16.mxu0 0
  %565 = vmatpush1.bf16.msra.mxu0 0
  %566 = vmatprep.subr.bf16.mxu0 0
  %567 = vmatpush1.bf16.msra.mxu0 0
  %568 = vmatprep.subr.bf16.mxu0 0
  %569 = vmatpush1.bf16.msra.mxu0 0
  %570 = vmatprep.subr.bf16.mxu0 0
  %571 = vmatpush1.bf16.msra.mxu0 0
  %572 = vmatprep.subr.bf16.mxu0 0
  %573 = vmatpush1.bf16.msra.mxu0 0
  %574 = vmatprep.subr.bf16.mxu0 0
  %575 = vmatpush1.bf16.msra.mxu0 0
  %576 = vmatprep.subr.bf16.mxu0 0
  %577 = vmatpush1.bf16.msra.mxu0 0
  %578 = vmatprep.mubr.bf16.mxu0 0
  %579 = vmatmul.mubr.bf16.gmra.mrb[0].mxu0 %v526
  %v580 = vpop.f32.mrb[0].mxu0
  %v581 = vadd.f32 0.0, %v580
  %v582 = vpop.f32.mrb[0].mxu0
  %v583 = vadd.f32 0.0, %v582
  %v584 = vpop.f32.mrb[0].mxu0
  %v585 = vpop.f32.mrb[0].mxu0
  %586 = vdwg.mxu0
  %587 = vmatprep.subr.bf16.mxu0 %v541
  %588 = vmatpush1.bf16.msra.mxu0 %v538
  %589 = vmatprep.subr.bf16.mxu0 0
  %590 = vmatpush1.bf16.msra.mxu0 0
  %591 = vmatprep.subr.bf16.mxu0 0
  %592 = vmatpush1.bf16.msra.mxu0 0
  %593 = vmatprep.subr.bf16.mxu0 0
  %594 = vmatpush1.bf16.msra.mxu0 0
  %595 = vmatprep.subr.bf16.mxu0 0
  %596 = vmatpush1.bf16.msra.mxu0 0
  %597 = vmatprep.subr.bf16.mxu0 0
  %598 = vmatpush1.bf16.msra.mxu0 0
  %599 = vmatprep.subr.bf16.mxu0 0
  %600 = vmatpush1.bf16.msra.mxu0 0
  %601 = vmatprep.subr.bf16.mxu0 0
  %602 = vmatpush1.bf16.msra.mxu0 0
  %603 = vmatprep.subr.bf16.mxu0 0
  %604 = vmatpush1.bf16.msra.mxu0 0
  %605 = vmatprep.subr.bf16.mxu0 0
  %606 = vmatpush1.bf16.msra.mxu0 0
  %607 = vmatprep.subr.bf16.mxu0 0
  %608 = vmatpush1.bf16.msra.mxu0 0
  %609 = vmatprep.subr.bf16.mxu0 0
  %610 = vmatpush1.bf16.msra.mxu0 0
  %611 = vmatprep.subr.bf16.mxu0 0
  %612 = vmatpush1.bf16.msra.mxu0 0
  %613 = vmatprep.subr.bf16.mxu0 0
  %614 = vmatpush1.bf16.msra.mxu0 0
  %615 = vmatprep.subr.bf16.mxu0 0
  %616 = vmatpush1.bf16.msra.mxu0 0
  %617 = vmatprep.subr.bf16.mxu0 0
  %618 = vmatpush1.bf16.msra.mxu0 0
  %619 = vmatprep.mubr.bf16.mxu0 0
  %620 = vmatmul.mubr.bf16.gmra.mrb[0].mxu0 %v526
  %v621 = vpop.f32.mrb[0].mxu0
  %v622 = vadd.f32 0.0, %v621
  %v623 = vpop.f32.mrb[0].mxu0
  %v624 = vadd.f32 0.0, %v623
  %v625 = vpop.f32.mrb[0].mxu0
  %v626 = vpop.f32.mrb[0].mxu0
  %627 = vdwg.mxu0
  %628 = vmatprep.subr.bf16.mxu0 0
  %629 = vmatpush1.bf16.msra.mxu0 %v544
  %630 = vmatprep.subr.bf16.mxu0 0
  %631 = vmatpush1.bf16.msra.mxu0 0
  %632 = vmatprep.subr.bf16.mxu0 0
  %633 = vmatpush1.bf16.msra.mxu0 0
  %634 = vmatprep.subr.bf16.mxu0 0
  %635 = vmatpush1.bf16.msra.mxu0 0
  %636 = vmatprep.subr.bf16.mxu0 0
  %637 = vmatpush1.bf16.msra.mxu0 0
  %638 = vmatprep.subr.bf16.mxu0 0
  %639 = vmatpush1.bf16.msra.mxu0 0
  %640 = vmatprep.subr.bf16.mxu0 0
  %641 = vmatpush1.bf16.msra.mxu0 0
  %642 = vmatprep.subr.bf16.mxu0 0
  %643 = vmatpush1.bf16.msra.mxu0 0
  %644 = vmatprep.subr.bf16.mxu0 0
  %645 = vmatpush1.bf16.msra.mxu0 0
  %646 = vmatprep.subr.bf16.mxu0 0
  %647 = vmatpush1.bf16.msra.mxu0 0
  %648 = vmatprep.subr.bf16.mxu0 0
  %649 = vmatpush1.bf16.msra.mxu0 0
  %650 = vmatprep.subr.bf16.mxu0 0
  %651 = vmatpush1.bf16.msra.mxu0 0
  %652 = vmatprep.subr.bf16.mxu0 0
  %653 = vmatpush1.bf16.msra.mxu0 0
  %654 = vmatprep.subr.bf16.mxu0 0
  %655 = vmatpush1.bf16.msra.mxu0 0
  %656 = vmatprep.subr.bf16.mxu0 0
  %657 = vmatpush1.bf16.msra.mxu0 0
  %658 = vmatprep.subr.bf16.mxu0 0
  %659 = vmatpush1.bf16.msra.mxu0 0
  %660 = vmatprep.mubr.bf16.mxu0 0
  %661 = vmatmul.mubr.bf16.gmra.mrb[0].mxu0 %v526
  %v662 = vpop.f32.mrb[0].mxu0
  %v663 = vadd.f32 0.0, %v662
  %v664 = vpop.f32.mrb[0].mxu0
  %v665 = vpop.f32.mrb[0].mxu0
  %v666 = vpop.f32.mrb[0].mxu0
  %667 = vdwg.mxu0
  %v669 = vlaneseq
  %v670 = vshrl.u32 %v669, 7
  %v671 = vsub.s32 0, %v670
  %v672 = vrot.slane %v73, %v671
  %v673 = vlaneseq
  %v674 = vshrl.u32 %v673, 7
  %v675 = vsub.s32 1, %v674
  %v676 = vrot.slane %v73, %v675
  %v677 = vlaneseq
  %v678 = vshrl.u32 %v677, 7
  %v679 = vsub.s32 2, %v678
  %v680 = vrot.slane %v73, %v679
  %v681 = vlaneseq
  %v682 = vshrl.u32 %v681, 7
  %v683 = vsub.s32 3, %v682
  %v684 = vrot.slane %v73, %v683
  %v685 = vlaneseq
  %v686 = vshrl.u32 %v685, 7
  %v687 = vsub.s32 4, %v686
  %v688 = vrot.slane %v73, %v687
  %v694 = vmul.f32 %v581, %v672
  %v695 = vmul.f32 %v583, %v676
  %v696 = vmul.f32 %v622, %v680
  %v697 = vmul.f32 %v624, %v684
  %v698 = vmul.f32 %v663, %v688
  %v699 = vadd.f32 %v694, %v695
  %v700 = vadd.f32 %v699, %v696
  %v701 = vadd.f32 %v700, %v697
  %vm702 = vcmask 113664
  %v703 = vsel %vm702, %v698, 0.0
  %v704 = vadd.f32 %v701, %v703
  %705 = vadd.xlane.f32.xlu0 %v704
  %v706 = vpop.xlane.xlu0 %705
  %v707 = vmul.f32 %v694, %v694
  %v708 = vmul.f32 %v695, %v695
  %v709 = vmul.f32 %v696, %v696
  %v710 = vmul.f32 %v697, %v697
  %v711 = vmul.f32 %v698, %v698
  %v712 = vadd.f32 %v707, %v708
  %v713 = vadd.f32 %v712, %v709
  %v714 = vadd.f32 %v713, %v710
  %v715 = vsel %vm702, %v711, 0.0
  %v716 = vadd.f32 %v714, %v715
  %717 = vadd.xlane.f32.xlu0 %v716
  %v718 = vpop.xlane.xlu0 %717
  %v719 = vrcp.pop 256.0
  %v720 = vmul.f32 %v706, %v719
  %v721 = vmul.f32 %v718, %v719
  %v722 = vmul.f32 %v720, %v720
  %v723 = vsub.f32 %v721, %v722
  %v724 = vmax.f32 %v723, 0.0
  %v725 = vadd.f32 %v724, 1e-05
  %v726 = vrsqrt.pop %v725
  %v727 = vmul.f32 %v71, %v726
  %v728 = vmul.f32 %v720, %v727
  %v729 = vsub.f32 %v72, %v728
  %731 = vset.pattern.permute.xlu0 0
  %732 = vperm.xlu0 %731, %v727
  %v733 = vpop.permute.xlu0 %732
  %v735 = vmul.f32 %v581, %v733
  %v736 = vmul.f32 %v583, %v733
  %v737 = vmul.f32 %v622, %v733
  %v738 = vmul.f32 %v624, %v733
  %v739 = vmul.f32 %v663, %v733
  %741 = vset.pattern.permute.xlu0 0
  %742 = vperm.xlu0 %741, %v729
  %v743 = vpop.permute.xlu0 %742
  %v745 = vadd.f32 %v735, %v743
  %v746 = vadd.f32 %v736, %v743
  %v747 = vadd.f32 %v737, %v743
  %v748 = vadd.f32 %v738, %v743
  %v749 = vadd.f32 %v739, %v743
  %v750 = vmax.f32 %v745, 0.0
  %v751 = vmax.f32 %v746, 0.0
  %v752 = vmax.f32 %v747, 0.0
  %v753 = vmax.f32 %v748, 0.0
  %v754 = vmax.f32 %v749, 0.0
  %v756 = vlaneseq
  %v757 = vshrl.u32 %v756, 7
  %v758 = vsub.s32 0, %v757
  %v759 = vrot.slane %v74, %v758
  %v760 = vlaneseq
  %v761 = vshrl.u32 %v760, 7
  %v762 = vsub.s32 1, %v761
  %v763 = vrot.slane %v74, %v762
  %v764 = vlaneseq
  %v765 = vshrl.u32 %v764, 7
  %v766 = vsub.s32 2, %v765
  %v767 = vrot.slane %v74, %v766
  %v768 = vlaneseq
  %v769 = vshrl.u32 %v768, 7
  %v770 = vsub.s32 3, %v769
  %v771 = vrot.slane %v74, %v770
  %v772 = vlaneseq
  %v773 = vshrl.u32 %v772, 7
  %v774 = vsub.s32 4, %v773
  %v775 = vrot.slane %v74, %v774
  %v781 = vmul.f32 %v750, %v759
  %v782 = vmul.f32 %v751, %v763
  %v783 = vmul.f32 %v752, %v767
  %v784 = vmul.f32 %v753, %v771
  %v785 = vmul.f32 %v754, %v775
  %791 = vrot.lane.b32.xlu0 %v781, 126
  %v792 = vpop.permute.xlu0 %791
  %793 = vrot.lane.b32.xlu0 %v782, 126
  %v794 = vpop.permute.xlu0 %793
  %795 = vrot.lane.b32.xlu0 %v783, 126
  %v796 = vpop.permute.xlu0 %795
  %797 = vrot.lane.b32.xlu0 %v784, 126
  %v798 = vpop.permute.xlu0 %797
  %799 = vrot.lane.b32.xlu0 %v785, 126
  %v800 = vpop.permute.xlu0 %799
  %v801 = vsel %vm197, %v792, %v794
  %v802 = vsel %vm197, %v794, %v796
  %v803 = vsel %vm197, %v796, %v798
  %v804 = vsel %vm197, %v798, %v800
  %vm810 = vcmask 97280
  %v811 = vsel %vm810, %v800, 0.0
  %812 = vrot.lane.b32.xlu0 %v781, 2
  %v813 = vpop.permute.xlu0 %812
  %814 = vrot.lane.b32.xlu0 %v782, 2
  %v815 = vpop.permute.xlu0 %814
  %816 = vrot.lane.b32.xlu0 %v783, 2
  %v817 = vpop.permute.xlu0 %816
  %818 = vrot.lane.b32.xlu0 %v784, 2
  %v819 = vpop.permute.xlu0 %818
  %820 = vrot.lane.b32.xlu0 %v785, 2
  %v821 = vpop.permute.xlu0 %820
  %vm822 = vcmask 15360
  %v823 = vsel %vm822, %v813, %v815
  %v824 = vsel %vm822, %v815, %v817
  %v825 = vsel %vm822, %v817, %v819
  %v826 = vsel %vm822, %v819, %v821
  %v832 = vsel %vm822, 0.0, %v813
  %v833 = vmax.f32 %v781, %v801
  %v834 = vmax.f32 %v782, %v802
  %v835 = vmax.f32 %v783, %v803
  %v836 = vmax.f32 %v784, %v804
  %v837 = vmax.f32 %v785, %v811
  %v838 = vmax.f32 %v833, %v832
  %v839 = vmax.f32 %v834, %v823
  %v840 = vmax.f32 %v835, %v824
  %v841 = vmax.f32 %v836, %v825
  %v842 = vmax.f32 %v837, %v826
  %v843 = vpack.c.bf16 %v838, %v838
  %v844 = vpack.c.bf16 %v839, %v839
  %v845 = vpack.c.bf16 %v840, %v840
  %v846 = vpack.c.bf16 %v841, %v841
  %v847 = vpack.c.bf16 %v842, %v842
  %v914 = vunpack.c.l.b16 %v75
  %v915 = vunpack.c.h.b16 %v75
  %v916 = vunpack.c.l.b16 %v76
  %v917 = vunpack.c.h.b16 %v76
  %v918 = vunpack.c.l.b16 %v77
  %v919 = vunpack.c.h.b16 %v77
  %v920 = vunpack.c.l.b16 %v78
  %v921 = vunpack.c.h.b16 %v78
  %v922 = vunpack.c.l.b16 %v79
  %v923 = vunpack.c.h.b16 %v79
  %v924 = vunpack.c.l.b16 %v80
  %v925 = vunpack.c.h.b16 %v80
  %v926 = vunpack.c.l.b16 %v81
  %v927 = vunpack.c.h.b16 %v81
  %v928 = vunpack.c.l.b16 %v82
  %v929 = vunpack.c.h.b16 %v82
  %v930 = vunpack.c.l.b16 %v83
  %v931 = vunpack.c.h.b16 %v83
  %v932 = vunpack.c.l.b16 %v84
  %v933 = vunpack.c.h.b16 %v84
  %v934 = vunpack.c.l.b16 %v85
  %v935 = vunpack.c.h.b16 %v85
  %v936 = vunpack.c.l.b16 %v86
  %v937 = vunpack.c.h.b16 %v86
  %v938 = vunpack.c.l.b16 %v87
  %v939 = vunpack.c.h.b16 %v87
  %v940 = vunpack.c.l.b16 %v88
  %v941 = vunpack.c.h.b16 %v88
  %v942 = vunpack.c.l.b16 %v89
  %v943 = vunpack.c.h.b16 %v89
  %v944 = vunpack.c.l.b16 %v90
  %v945 = vunpack.c.h.b16 %v90
  %v946 = vunpack.c.l.b16 %v91
  %v947 = vunpack.c.h.b16 %v91
  %v948 = vunpack.c.l.b16 %v92
  %v949 = vunpack.c.h.b16 %v92
  %v950 = vunpack.c.l.b16 %v93
  %v951 = vunpack.c.h.b16 %v93
  %v952 = vunpack.c.l.b16 %v94
  %v953 = vunpack.c.h.b16 %v94
  %v954 = vunpack.c.l.b16 %v95
  %v955 = vunpack.c.h.b16 %v95
  %v956 = vunpack.c.l.b16 %v96
  %v957 = vunpack.c.h.b16 %v96
  %v958 = vunpack.c.l.b16 %v97
  %v959 = vunpack.c.h.b16 %v97
  %v960 = vunpack.c.l.b16 %v98
  %v961 = vunpack.c.h.b16 %v98
  %v962 = vunpack.c.l.b16 %v99
  %v963 = vunpack.c.h.b16 %v99
  %v964 = vunpack.c.l.b16 %v100
  %v965 = vunpack.c.h.b16 %v100
  %v966 = vunpack.c.l.b16 %v101
  %v967 = vunpack.c.h.b16 %v101
  %v968 = vunpack.c.l.b16 %v102
  %v969 = vunpack.c.h.b16 %v102
  %v970 = vunpack.c.l.b16 %v103
  %v971 = vunpack.c.h.b16 %v103
  %v972 = vunpack.c.l.b16 %v104
  %v973 = vunpack.c.h.b16 %v104
  %v974 = vunpack.c.l.b16 %v105
  %v975 = vunpack.c.h.b16 %v105
  %v976 = vunpack.c.l.b16 %v106
  %v977 = vunpack.c.h.b16 %v106
  %v978 = vunpack.c.l.b16 %v107
  %v979 = vunpack.c.h.b16 %v107
  %v980 = vunpack.c.l.b16 %v108
  %v981 = vunpack.c.h.b16 %v108
  %v982 = vunpack.c.l.b16 %v109
  %v983 = vunpack.c.h.b16 %v109
  %v984 = vunpack.c.l.b16 %v110
  %v985 = vunpack.c.h.b16 %v110
  %v986 = vunpack.c.l.b16 %v111
  %v987 = vunpack.c.h.b16 %v111
  %v988 = vunpack.c.l.b16 %v112
  %v989 = vunpack.c.h.b16 %v112
  %v990 = vunpack.c.l.b16 %v113
  %v991 = vunpack.c.h.b16 %v113
  %v992 = vunpack.c.l.b16 %v114
  %v993 = vunpack.c.h.b16 %v114
  %v994 = vunpack.c.l.b16 %v115
  %v995 = vunpack.c.h.b16 %v115
  %v996 = vunpack.c.l.b16 %v116
  %v997 = vunpack.c.h.b16 %v116
  %v998 = vunpack.c.l.b16 %v117
  %v999 = vunpack.c.h.b16 %v117
  %v1000 = vunpack.c.l.b16 %v118
  %v1001 = vunpack.c.h.b16 %v118
  %v1002 = vunpack.c.l.b16 %v119
  %v1003 = vunpack.c.h.b16 %v119
  %v1004 = vunpack.c.l.b16 %v120
  %v1005 = vunpack.c.h.b16 %v120
  %v1006 = vunpack.c.l.b16 %v121
  %v1007 = vunpack.c.h.b16 %v121
  %v1008 = vunpack.c.l.b16 %v122
  %v1009 = vunpack.c.h.b16 %v122
  %v1010 = vunpack.c.l.b16 %v123
  %v1011 = vunpack.c.h.b16 %v123
  %v1012 = vunpack.c.l.b16 %v124
  %v1013 = vunpack.c.h.b16 %v124
  %v1014 = vunpack.c.l.b16 %v125
  %v1015 = vunpack.c.h.b16 %v125
  %v1016 = vunpack.c.l.b16 %v126
  %v1017 = vunpack.c.h.b16 %v126
  %v1018 = vunpack.c.l.b16 %v127
  %v1019 = vunpack.c.h.b16 %v127
  %v1020 = vunpack.c.l.b16 %v128
  %v1021 = vunpack.c.h.b16 %v128
  %v1022 = vunpack.c.l.b16 %v129
  %v1023 = vunpack.c.h.b16 %v129
  %v1024 = vunpack.c.l.b16 %v130
  %v1025 = vunpack.c.h.b16 %v130
  %v1026 = vunpack.c.l.b16 %v131
  %v1027 = vunpack.c.h.b16 %v131
  %v1028 = vunpack.c.l.b16 %v132
  %v1029 = vunpack.c.h.b16 %v132
  %v1030 = vunpack.c.l.b16 %v133
  %v1031 = vunpack.c.h.b16 %v133
  %v1032 = vunpack.c.l.b16 %v134
  %v1033 = vunpack.c.h.b16 %v134
  %v1034 = vunpack.c.l.b16 %v135
  %v1035 = vunpack.c.h.b16 %v135
  %v1036 = vunpack.c.l.b16 %v136
  %v1037 = vunpack.c.h.b16 %v136
  %v1038 = vunpack.c.l.b16 %v137
  %v1039 = vunpack.c.h.b16 %v137
  %v1040 = vunpack.c.l.b16 %v138
  %v1041 = vunpack.c.h.b16 %v138
  %v1042 = vunpack.c.l.b16 %v139
  %v1043 = vunpack.c.h.b16 %v139
  %v1044 = vunpack.c.l.b16 %v140
  %v1045 = vunpack.c.h.b16 %v140
  %v1046 = vpack.c.b16 %v916, %v914
  %v1047 = vpack.c.b16 %v917, %v915
  %v1048 = vpack.c.b16 %v920, %v918
  %v1049 = vpack.c.b16 %v921, %v919
  %v1050 = vpack.c.b16 %v924, %v922
  %v1051 = vpack.c.b16 %v925, %v923
  %v1052 = vpack.c.b16 %v928, %v926
  %v1053 = vpack.c.b16 %v929, %v927
  %v1054 = vpack.c.b16 %v932, %v930
  %v1055 = vpack.c.b16 %v933, %v931
  %v1056 = vpack.c.b16 %v936, %v934
  %v1057 = vpack.c.b16 %v937, %v935
  %v1058 = vpack.c.b16 %v940, %v938
  %v1059 = vpack.c.b16 %v941, %v939
  %v1060 = vpack.c.b16 %v944, %v942
  %v1061 = vpack.c.b16 %v945, %v943
  %v1062 = vpack.c.b16 %v948, %v946
  %v1063 = vpack.c.b16 %v949, %v947
  %v1064 = vpack.c.b16 %v952, %v950
  %v1065 = vpack.c.b16 %v953, %v951
  %v1066 = vpack.c.b16 %v956, %v954
  %v1067 = vpack.c.b16 %v957, %v955
  %v1068 = vpack.c.b16 %v960, %v958
  %v1069 = vpack.c.b16 %v961, %v959
  %v1070 = vpack.c.b16 %v964, %v962
  %v1071 = vpack.c.b16 %v965, %v963
  %v1072 = vpack.c.b16 %v968, %v966
  %v1073 = vpack.c.b16 %v969, %v967
  %v1074 = vpack.c.b16 %v972, %v970
  %v1075 = vpack.c.b16 %v973, %v971
  %v1076 = vpack.c.b16 %v976, %v974
  %v1077 = vpack.c.b16 %v977, %v975
  %v1078 = vpack.c.b16 %v980, %v978
  %v1079 = vpack.c.b16 %v981, %v979
  %v1080 = vpack.c.b16 %v984, %v982
  %v1081 = vpack.c.b16 %v985, %v983
  %v1082 = vpack.c.b16 %v988, %v986
  %v1083 = vpack.c.b16 %v989, %v987
  %v1084 = vpack.c.b16 %v992, %v990
  %v1085 = vpack.c.b16 %v993, %v991
  %v1086 = vpack.c.b16 %v996, %v994
  %v1087 = vpack.c.b16 %v997, %v995
  %v1088 = vpack.c.b16 %v1000, %v998
  %v1089 = vpack.c.b16 %v1001, %v999
  %v1090 = vpack.c.b16 %v1004, %v1002
  %v1091 = vpack.c.b16 %v1005, %v1003
  %v1092 = vpack.c.b16 %v1008, %v1006
  %v1093 = vpack.c.b16 %v1009, %v1007
  %v1094 = vpack.c.b16 %v1012, %v1010
  %v1095 = vpack.c.b16 %v1013, %v1011
  %v1096 = vpack.c.b16 %v1016, %v1014
  %v1097 = vpack.c.b16 %v1017, %v1015
  %v1098 = vpack.c.b16 %v1020, %v1018
  %v1099 = vpack.c.b16 %v1021, %v1019
  %v1100 = vpack.c.b16 %v1024, %v1022
  %v1101 = vpack.c.b16 %v1025, %v1023
  %v1102 = vpack.c.b16 %v1028, %v1026
  %v1103 = vpack.c.b16 %v1029, %v1027
  %v1104 = vpack.c.b16 %v1032, %v1030
  %v1105 = vpack.c.b16 %v1033, %v1031
  %v1106 = vpack.c.b16 %v1036, %v1034
  %v1107 = vpack.c.b16 %v1037, %v1035
  %v1108 = vpack.c.b16 %v1040, %v1038
  %v1109 = vpack.c.b16 %v1041, %v1039
  %v1110 = vpack.c.b16 %v1044, %v1042
  %v1111 = vpack.c.b16 %v1045, %v1043
  %v1177 = vsel %vm702, %v847, 0
  %v1180 = vsel %vm483, %v1110, 0
  %v1183 = vsel %vm483, %v1111, 0
  %1185 = vmatprep.subr.bf16.mxu0 %v1047
  %1186 = vmatpush1.bf16.msra.mxu0 %v1046
  %1187 = vmatprep.subr.bf16.mxu0 %v1049
  %1188 = vmatpush1.bf16.msra.mxu0 %v1048
  %1189 = vmatprep.subr.bf16.mxu0 %v1051
  %1190 = vmatpush1.bf16.msra.mxu0 %v1050
  %1191 = vmatprep.subr.bf16.mxu0 %v1053
  %1192 = vmatpush1.bf16.msra.mxu0 %v1052
  %1193 = vmatprep.subr.bf16.mxu0 %v1055
  %1194 = vmatpush1.bf16.msra.mxu0 %v1054
  %1195 = vmatprep.subr.bf16.mxu0 %v1057
  %1196 = vmatpush1.bf16.msra.mxu0 %v1056
  %1197 = vmatprep.subr.bf16.mxu0 %v1059
  %1198 = vmatpush1.bf16.msra.mxu0 %v1058
  %1199 = vmatprep.subr.bf16.mxu0 %v1061
  %1200 = vmatpush1.bf16.msra.mxu0 %v1060
  %1201 = vmatprep.subr.bf16.mxu0 %v1063
  %1202 = vmatpush1.bf16.msra.mxu0 %v1062
  %1203 = vmatprep.subr.bf16.mxu0 %v1065
  %1204 = vmatpush1.bf16.msra.mxu0 %v1064
  %1205 = vmatprep.subr.bf16.mxu0 %v1067
  %1206 = vmatpush1.bf16.msra.mxu0 %v1066
  %1207 = vmatprep.subr.bf16.mxu0 %v1069
  %1208 = vmatpush1.bf16.msra.mxu0 %v1068
  %1209 = vmatprep.subr.bf16.mxu0 %v1071
  %1210 = vmatpush1.bf16.msra.mxu0 %v1070
  %1211 = vmatprep.subr.bf16.mxu0 %v1073
  %1212 = vmatpush1.bf16.msra.mxu0 %v1072
  %1213 = vmatprep.subr.bf16.mxu0 %v1075
  %1214 = vmatpush1.bf16.msra.mxu0 %v1074
  %1215 = vmatprep.subr.bf16.mxu0 %v1077
  %1216 = vmatpush1.bf16.msra.mxu0 %v1076
  %1217 = vmatprep.mubr.bf16.mxu0 %v844
  %1218 = vmatmul.mubr.bf16.gmra.mrb[0].mxu0 %v843
  %v1219 = vpop.f32.mrb[0].mxu0
  %v1220 = vadd.f32 0.0, %v1219
  %v1221 = vpop.f32.mrb[0].mxu0
  %v1222 = vadd.f32 0.0, %v1221
  %v1223 = vpop.f32.mrb[0].mxu0
  %v1224 = vpop.f32.mrb[0].mxu0
  %1225 = vdwg.mxu0
  %1226 = vmatprep.subr.bf16.mxu0 %v1079
  %1227 = vmatpush1.bf16.msra.mxu0 %v1078
  %1228 = vmatprep.subr.bf16.mxu0 %v1081
  %1229 = vmatpush1.bf16.msra.mxu0 %v1080
  %1230 = vmatprep.subr.bf16.mxu0 %v1083
  %1231 = vmatpush1.bf16.msra.mxu0 %v1082
  %1232 = vmatprep.subr.bf16.mxu0 %v1085
  %1233 = vmatpush1.bf16.msra.mxu0 %v1084
  %1234 = vmatprep.subr.bf16.mxu0 %v1087
  %1235 = vmatpush1.bf16.msra.mxu0 %v1086
  %1236 = vmatprep.subr.bf16.mxu0 %v1089
  %1237 = vmatpush1.bf16.msra.mxu0 %v1088
  %1238 = vmatprep.subr.bf16.mxu0 %v1091
  %1239 = vmatpush1.bf16.msra.mxu0 %v1090
  %1240 = vmatprep.subr.bf16.mxu0 %v1093
  %1241 = vmatpush1.bf16.msra.mxu0 %v1092
  %1242 = vmatprep.subr.bf16.mxu0 %v1095
  %1243 = vmatpush1.bf16.msra.mxu0 %v1094
  %1244 = vmatprep.subr.bf16.mxu0 %v1097
  %1245 = vmatpush1.bf16.msra.mxu0 %v1096
  %1246 = vmatprep.subr.bf16.mxu0 %v1099
  %1247 = vmatpush1.bf16.msra.mxu0 %v1098
  %1248 = vmatprep.subr.bf16.mxu0 %v1101
  %1249 = vmatpush1.bf16.msra.mxu0 %v1100
  %1250 = vmatprep.subr.bf16.mxu0 %v1103
  %1251 = vmatpush1.bf16.msra.mxu0 %v1102
  %1252 = vmatprep.subr.bf16.mxu0 %v1105
  %1253 = vmatpush1.bf16.msra.mxu0 %v1104
  %1254 = vmatprep.subr.bf16.mxu0 %v1107
  %1255 = vmatpush1.bf16.msra.mxu0 %v1106
  %1256 = vmatprep.subr.bf16.mxu0 %v1109
  %1257 = vmatpush1.bf16.msra.mxu0 %v1108
  %1258 = vmatprep.mubr.bf16.mxu0 %v846
  %1259 = vmatmul.mubr.bf16.gmra.mrb[0].mxu0 %v845
  %v1260 = vpop.f32.mrb[0].mxu0
  %v1261 = vadd.f32 %v1220, %v1260
  %v1262 = vpop.f32.mrb[0].mxu0
  %v1263 = vadd.f32 %v1222, %v1262
  %v1264 = vpop.f32.mrb[0].mxu0
  %v1265 = vpop.f32.mrb[0].mxu0
  %1266 = vdwg.mxu0
  %1267 = vmatprep.subr.bf16.mxu0 %v1183
  %1268 = vmatpush1.bf16.msra.mxu0 %v1180
  %1269 = vmatprep.subr.bf16.mxu0 0
  %1270 = vmatpush1.bf16.msra.mxu0 0
  %1271 = vmatprep.subr.bf16.mxu0 0
  %1272 = vmatpush1.bf16.msra.mxu0 0
  %1273 = vmatprep.subr.bf16.mxu0 0
  %1274 = vmatpush1.bf16.msra.mxu0 0
  %1275 = vmatprep.subr.bf16.mxu0 0
  %1276 = vmatpush1.bf16.msra.mxu0 0
  %1277 = vmatprep.subr.bf16.mxu0 0
  %1278 = vmatpush1.bf16.msra.mxu0 0
  %1279 = vmatprep.subr.bf16.mxu0 0
  %1280 = vmatpush1.bf16.msra.mxu0 0
  %1281 = vmatprep.subr.bf16.mxu0 0
  %1282 = vmatpush1.bf16.msra.mxu0 0
  %1283 = vmatprep.subr.bf16.mxu0 0
  %1284 = vmatpush1.bf16.msra.mxu0 0
  %1285 = vmatprep.subr.bf16.mxu0 0
  %1286 = vmatpush1.bf16.msra.mxu0 0
  %1287 = vmatprep.subr.bf16.mxu0 0
  %1288 = vmatpush1.bf16.msra.mxu0 0
  %1289 = vmatprep.subr.bf16.mxu0 0
  %1290 = vmatpush1.bf16.msra.mxu0 0
  %1291 = vmatprep.subr.bf16.mxu0 0
  %1292 = vmatpush1.bf16.msra.mxu0 0
  %1293 = vmatprep.subr.bf16.mxu0 0
  %1294 = vmatpush1.bf16.msra.mxu0 0
  %1295 = vmatprep.subr.bf16.mxu0 0
  %1296 = vmatpush1.bf16.msra.mxu0 0
  %1297 = vmatprep.subr.bf16.mxu0 0
  %1298 = vmatpush1.bf16.msra.mxu0 0
  %1299 = vmatprep.mubr.bf16.mxu0 0
  %1300 = vmatmul.mubr.bf16.gmra.mrb[0].mxu0 %v1177
  %v1301 = vpop.f32.mrb[0].mxu0
  %v1302 = vadd.f32 %v1261, %v1301
  %v1303 = vpop.f32.mrb[0].mxu0
  %v1304 = vadd.f32 %v1263, %v1303
  %v1305 = vpop.f32.mrb[0].mxu0
  %v1306 = vpop.f32.mrb[0].mxu0
  %1307 = vdwg.mxu0
  %v1308 = vld [vmem:[%s7] sm:$0xf]
  %v1309 = vld [vmem:[%s7 + $0x4] sm:$0xf]
  %v1310 = vld [vmem:[%s8] sm:$0xff]
  %v1311 = vld [vmem:[%s8 + $0x8] sm:$0xff]
  %v1312 = vld [vmem:[%s9] sm:$0xff]
  %v1313 = vld [vmem:[%s9 + $0x8] sm:$0xff]
  %v1314 = vld [vmem:[%s10] sm:$0x3]
  %v1315 = vld [vmem:[%s11] sm:$0x3]
  %v1316 = vld [vmem:[%s12] sm:$0xf]
  %v1317 = vld [vmem:[%s12 + $0x4] sm:$0xf]
  %v1318 = vld [vmem:[%s12 + $0x8] sm:$0xf]
  %v1319 = vld [vmem:[%s12 + $0xc] sm:$0xf]
  %v1320 = vld [vmem:[%s12 + $0x10] sm:$0xf]
  %v1321 = vld [vmem:[%s12 + $0x14] sm:$0xf]
  %v1322 = vld [vmem:[%s12 + $0x18] sm:$0xf]
  %v1323 = vld [vmem:[%s12 + $0x1c] sm:$0xf]
  %v1324 = vld [vmem:[%s12 + $0x20] sm:$0xf]
  %v1325 = vld [vmem:[%s12 + $0x24] sm:$0xf]
  %v1326 = vld [vmem:[%s12 + $0x28] sm:$0xf]
  %v1327 = vld [vmem:[%s12 + $0x2c] sm:$0xf]
  %v1328 = vld [vmem:[%s12 + $0x30] sm:$0xf]
  %v1329 = vld [vmem:[%s12 + $0x34] sm:$0xf]
  %v1330 = vld [vmem:[%s12 + $0x38] sm:$0xf]
  %v1331 = vld [vmem:[%s12 + $0x3c] sm:$0xf]
  %v1332 = vld [vmem:[%s12 + $0x40] sm:$0xf]
  %v1333 = vld [vmem:[%s12 + $0x44] sm:$0x7]
  %v1334 = vpack.c.bf16 %v1302, %v1302
  %v1335 = vpack.c.bf16 %v1304, %v1304
  %v1338 = vrot.slane %v1334, 4
  %v1339 = vrot.slane %v1335, 4
  %1340 = vrot.lane.b32.xlu0 %v1338, 127
  %v1341 = vpop.permute.xlu0 %1340
  %1342 = vrot.lane.b32.xlu0 %v1339, 127
  %v1343 = vpop.permute.xlu0 %1342
  %vm1344 = vcmask 1039360
  %v1345 = vsel %vm1344, %v1341, %v1343
  %1346 = vrot.lane.b32.xlu0 %v1334, 126
  %v1347 = vpop.permute.xlu0 %1346
  %1348 = vrot.lane.b32.xlu0 %v1335, 126
  %v1349 = vpop.permute.xlu0 %1348
  %vm1350 = vcmask 1031168
  %v1351 = vsel %vm1350, %v1347, %v1349
  %1352 = vrot.lane.b32.xlu0 %v1338, 125
  %v1353 = vpop.permute.xlu0 %1352
  %1354 = vrot.lane.b32.xlu0 %v1339, 125
  %v1355 = vpop.permute.xlu0 %1354
  %vm1356 = vcmask 1022976
  %v1357 = vsel %vm1356, %v1353, %v1355
  %1358 = vrot.lane.b32.xlu0 %v1334, 124
  %v1359 = vpop.permute.xlu0 %1358
  %1360 = vrot.lane.b32.xlu0 %v1335, 124
  %v1361 = vpop.permute.xlu0 %1360
  %vm1362 = vcmask 1014784
  %v1363 = vsel %vm1362, %v1359, %v1361
  %1364 = vrot.lane.b32.xlu0 %v1338, 123
  %v1365 = vpop.permute.xlu0 %1364
  %1366 = vrot.lane.b32.xlu0 %v1339, 123
  %v1367 = vpop.permute.xlu0 %1366
  %vm1368 = vcmask 1006592
  %v1369 = vsel %vm1368, %v1365, %v1367
  %1370 = vrot.lane.b32.xlu0 %v1334, 122
  %v1371 = vpop.permute.xlu0 %1370
  %1372 = vrot.lane.b32.xlu0 %v1335, 122
  %v1373 = vpop.permute.xlu0 %1372
  %vm1374 = vcmask 998400
  %v1375 = vsel %vm1374, %v1371, %v1373
  %1376 = vrot.lane.b32.xlu0 %v1338, 121
  %v1377 = vpop.permute.xlu0 %1376
  %1378 = vrot.lane.b32.xlu0 %v1339, 121
  %v1379 = vpop.permute.xlu0 %1378
  %vm1380 = vcmask 990208
  %v1381 = vsel %vm1380, %v1377, %v1379
  %1382 = vrot.lane.b32.xlu0 %v1334, 120
  %v1383 = vpop.permute.xlu0 %1382
  %1384 = vrot.lane.b32.xlu0 %v1335, 120
  %v1385 = vpop.permute.xlu0 %1384
  %vm1386 = vcmask 982016
  %v1387 = vsel %vm1386, %v1383, %v1385
  %1388 = vrot.lane.b32.xlu0 %v1338, 119
  %v1389 = vpop.permute.xlu0 %1388
  %1390 = vrot.lane.b32.xlu0 %v1339, 119
  %v1391 = vpop.permute.xlu0 %1390
  %vm1392 = vcmask 973824
  %v1393 = vsel %vm1392, %v1389, %v1391
  %1394 = vrot.lane.b32.xlu0 %v1334, 118
  %v1395 = vpop.permute.xlu0 %1394
  %1396 = vrot.lane.b32.xlu0 %v1335, 118
  %v1397 = vpop.permute.xlu0 %1396
  %vm1398 = vcmask 965632
  %v1399 = vsel %vm1398, %v1395, %v1397
  %1400 = vrot.lane.b32.xlu0 %v1338, 117
  %v1401 = vpop.permute.xlu0 %1400
  %1402 = vrot.lane.b32.xlu0 %v1339, 117
  %v1403 = vpop.permute.xlu0 %1402
  %vm1404 = vcmask 957440
  %v1405 = vsel %vm1404, %v1401, %v1403
  %1406 = vrot.lane.b32.xlu0 %v1334, 116
  %v1407 = vpop.permute.xlu0 %1406
  %1408 = vrot.lane.b32.xlu0 %v1335, 116
  %v1409 = vpop.permute.xlu0 %1408
  %vm1410 = vcmask 949248
  %v1411 = vsel %vm1410, %v1407, %v1409
  %1412 = vrot.lane.b32.xlu0 %v1338, 115
  %v1413 = vpop.permute.xlu0 %1412
  %1414 = vrot.lane.b32.xlu0 %v1339, 115
  %v1415 = vpop.permute.xlu0 %1414
  %vm1416 = vcmask 941056
  %v1417 = vsel %vm1416, %v1413, %v1415
  %1418 = vrot.lane.b32.xlu0 %v1334, 114
  %v1419 = vpop.permute.xlu0 %1418
  %1420 = vrot.lane.b32.xlu0 %v1335, 114
  %v1421 = vpop.permute.xlu0 %1420
  %vm1422 = vcmask 932864
  %v1423 = vsel %vm1422, %v1419, %v1421
  %v1426 = vsel %vm465, %v1334, %v1345
  %v1430 = vsel %vm465, %v1335, %v1343
  %v1434 = vsel %vm465, %v1351, %v1357
  %v1438 = vsel %vm465, %v1349, %v1355
  %v1442 = vsel %vm465, %v1363, %v1369
  %v1446 = vsel %vm465, %v1361, %v1367
  %v1450 = vsel %vm465, %v1375, %v1381
  %v1454 = vsel %vm465, %v1373, %v1379
  %v1458 = vsel %vm465, %v1387, %v1393
  %v1462 = vsel %vm465, %v1385, %v1391
  %v1466 = vsel %vm465, %v1399, %v1405
  %v1470 = vsel %vm465, %v1397, %v1403
  %v1474 = vsel %vm465, %v1411, %v1417
  %v1478 = vsel %vm465, %v1409, %v1415
  %v1482 = vunpack.c.l.b16 %v1308
  %v1483 = vunpack.c.l.b16 %v1309
  %v1484 = vpack.c.b16 %v1483, %v1482
  %v1486 = vsel %vm317, %v1484, 0
  %v1489 = vsel %vm465, %v1423, 0
  %v1492 = vsel %vm465, %v1421, 0
  %1494 = vmatprep.subr.bf16.mxu0 %v1430
  %1495 = vmatpush1.bf16.msra.mxu0 %v1426
  %1496 = vmatprep.subr.bf16.mxu0 %v1438
  %1497 = vmatpush1.bf16.msra.mxu0 %v1434
  %1498 = vmatprep.subr.bf16.mxu0 %v1446
  %1499 = vmatpush1.bf16.msra.mxu0 %v1442
  %1500 = vmatprep.subr.bf16.mxu0 %v1454
  %1501 = vmatpush1.bf16.msra.mxu0 %v1450
  %1502 = vmatprep.subr.bf16.mxu0 %v1462
  %1503 = vmatpush1.bf16.msra.mxu0 %v1458
  %1504 = vmatprep.subr.bf16.mxu0 %v1470
  %1505 = vmatpush1.bf16.msra.mxu0 %v1466
  %1506 = vmatprep.subr.bf16.mxu0 %v1478
  %1507 = vmatpush1.bf16.msra.mxu0 %v1474
  %1508 = vmatprep.subr.bf16.mxu0 %v1492
  %1509 = vmatpush1.bf16.msra.mxu0 %v1489
  %1510 = vmatprep.subr.bf16.mxu0 0
  %1511 = vmatpush1.bf16.msra.mxu0 0
  %1512 = vmatprep.subr.bf16.mxu0 0
  %1513 = vmatpush1.bf16.msra.mxu0 0
  %1514 = vmatprep.subr.bf16.mxu0 0
  %1515 = vmatpush1.bf16.msra.mxu0 0
  %1516 = vmatprep.subr.bf16.mxu0 0
  %1517 = vmatpush1.bf16.msra.mxu0 0
  %1518 = vmatprep.subr.bf16.mxu0 0
  %1519 = vmatpush1.bf16.msra.mxu0 0
  %1520 = vmatprep.subr.bf16.mxu0 0
  %1521 = vmatpush1.bf16.msra.mxu0 0
  %1522 = vmatprep.subr.bf16.mxu0 0
  %1523 = vmatpush1.bf16.msra.mxu0 0
  %1524 = vmatprep.subr.bf16.mxu0 0
  %1525 = vmatpush1.bf16.msra.mxu0 0
  %1526 = vmatprep.mubr.bf16.mxu0 0
  %1527 = vmatmul.mubr.bf16.gmra.mrb[0].mxu0 %v1486
  %v1528 = vpop.f32.mrb[0].mxu0
  %v1529 = vadd.f32 0.0, %v1528
  %v1530 = vpop.f32.mrb[0].mxu0
  %v1531 = vadd.f32 0.0, %v1530
  %v1532 = vpop.f32.mrb[0].mxu0
  %v1533 = vadd.f32 0.0, %v1532
  %v1534 = vpop.f32.mrb[0].mxu0
  %v1535 = vadd.f32 0.0, %v1534
  %1536 = vdwg.mxu0
  %v1538 = vlaneseq
  %v1539 = vshrl.u32 %v1538, 7
  %v1540 = vsub.s32 0, %v1539
  %v1541 = vrot.slane %v1314, %v1540
  %v1542 = vlaneseq
  %v1543 = vshrl.u32 %v1542, 7
  %v1544 = vsub.s32 1, %v1543
  %v1545 = vrot.slane %v1314, %v1544
  %v1548 = vmul.f32 %v1529, %v1541
  %v1549 = vmul.f32 %v1531, %v1545
  %v1550 = vmul.f32 %v1533, %v1541
  %v1551 = vmul.f32 %v1535, %v1545
  %v1552 = vsel %vm702, %v1549, 0.0
  %v1553 = vadd.f32 %v1548, %v1552
  %1554 = vadd.xlane.f32.xlu0 %v1553
  %v1555 = vpop.xlane.xlu0 %1554
  %v1556 = vsel %vm702, %v1551, 0.0
  %v1557 = vadd.f32 %v1550, %v1556
  %1558 = vadd.xlane.f32.xlu0 %v1557
  %v1559 = vpop.xlane.xlu0 %1558
  %v1560 = vmul.f32 %v1548, %v1548
  %v1561 = vmul.f32 %v1549, %v1549
  %v1562 = vmul.f32 %v1550, %v1550
  %v1563 = vmul.f32 %v1551, %v1551
  %v1564 = vsel %vm702, %v1561, 0.0
  %v1565 = vadd.f32 %v1560, %v1564
  %1566 = vadd.xlane.f32.xlu0 %v1565
  %v1567 = vpop.xlane.xlu0 %1566
  %v1568 = vsel %vm702, %v1563, 0.0
  %v1569 = vadd.f32 %v1562, %v1568
  %1570 = vadd.xlane.f32.xlu0 %v1569
  %v1571 = vpop.xlane.xlu0 %1570
  %v1572 = vrcp.pop 64.0
  %v1573 = vmul.f32 %v1555, %v1572
  %v1574 = vmul.f32 %v1559, %v1572
  %v1575 = vmul.f32 %v1567, %v1572
  %v1576 = vmul.f32 %v1571, %v1572
  %v1577 = vmul.f32 %v1573, %v1573
  %v1578 = vmul.f32 %v1574, %v1574
  %v1579 = vsub.f32 %v1575, %v1577
  %v1580 = vsub.f32 %v1576, %v1578
  %v1581 = vmax.f32 %v1579, 0.0
  %v1582 = vmax.f32 %v1580, 0.0
  %v1583 = vadd.f32 %v1581, 1e-05
  %v1584 = vadd.f32 %v1582, 1e-05
  %v1585 = vrsqrt.pop %v1583
  %v1586 = vrsqrt.pop %v1584
  %v1587 = vmul.f32 %v1310, %v1585
  %v1588 = vmul.f32 %v1311, %v1586
  %v1589 = vmul.f32 %v1573, %v1587
  %v1590 = vmul.f32 %v1574, %v1588
  %v1591 = vsub.f32 %v1312, %v1589
  %v1592 = vsub.f32 %v1313, %v1590
  %1594 = vset.pattern.permute.xlu0 0
  %1595 = vperm.xlu0 %1594, %v1587
  %v1596 = vpop.permute.xlu0 %1595
  %1599 = vset.pattern.permute.xlu0 0
  %1600 = vperm.xlu0 %1599, %v1588
  %v1601 = vpop.permute.xlu0 %1600
  %v1603 = vmul.f32 %v1529, %v1596
  %v1604 = vmul.f32 %v1531, %v1596
  %v1605 = vmul.f32 %v1533, %v1601
  %v1606 = vmul.f32 %v1535, %v1601
  %1608 = vset.pattern.permute.xlu0 0
  %1609 = vperm.xlu0 %1608, %v1591
  %v1610 = vpop.permute.xlu0 %1609
  %1613 = vset.pattern.permute.xlu0 0
  %1614 = vperm.xlu0 %1613, %v1592
  %v1615 = vpop.permute.xlu0 %1614
  %v1617 = vadd.f32 %v1603, %v1610
  %v1618 = vadd.f32 %v1604, %v1610
  %v1619 = vadd.f32 %v1605, %v1615
  %v1620 = vadd.f32 %v1606, %v1615
  %v1621 = vmax.f32 %v1617, 0.0
  %v1622 = vmax.f32 %v1618, 0.0
  %v1623 = vmax.f32 %v1619, 0.0
  %v1624 = vmax.f32 %v1620, 0.0
  %v1626 = vlaneseq
  %v1627 = vshrl.u32 %v1626, 7
  %v1628 = vsub.s32 0, %v1627
  %v1629 = vrot.slane %v1315, %v1628
  %v1630 = vlaneseq
  %v1631 = vshrl.u32 %v1630, 7
  %v1632 = vsub.s32 1, %v1631
  %v1633 = vrot.slane %v1315, %v1632
  %v1636 = vmul.f32 %v1621, %v1629
  %v1637 = vmul.f32 %v1622, %v1633
  %v1638 = vmul.f32 %v1623, %v1629
  %v1639 = vmul.f32 %v1624, %v1633
  %1644 = vrot.lane.b32.xlu0 %v1636, 126
  %v1645 = vpop.permute.xlu0 %1644
  %1646 = vrot.lane.b32.xlu0 %v1637, 126
  %v1647 = vpop.permute.xlu0 %1646
  %1648 = vrot.lane.b32.xlu0 %v1638, 126
  %v1649 = vpop.permute.xlu0 %1648
  %1650 = vrot.lane.b32.xlu0 %v1639, 126
  %v1651 = vpop.permute.xlu0 %1650
  %v1652 = vsel %vm197, %v1645, %v1647
  %v1653 = vsel %vm197, %v1649, %v1651
  %v1658 = vsel %vm810, %v1647, 0.0
  %v1659 = vsel %vm810, %v1651, 0.0
  %1660 = vrot.lane.b32.xlu0 %v1636, 2
  %v1661 = vpop.permute.xlu0 %1660
  %1662 = vrot.lane.b32.xlu0 %v1637, 2
  %v1663 = vpop.permute.xlu0 %1662
  %1664 = vrot.lane.b32.xlu0 %v1638, 2
  %v1665 = vpop.permute.xlu0 %1664
  %1666 = vrot.lane.b32.xlu0 %v1639, 2
  %v1667 = vpop.permute.xlu0 %1666
  %v1668 = vsel %vm822, %v1661, %v1663
  %v1669 = vsel %vm822, %v1665, %v1667
  %v1674 = vsel %vm822, 0.0, %v1661
  %v1675 = vsel %vm822, 0.0, %v1665
  %v1676 = vmax.f32 %v1636, %v1652
  %v1677 = vmax.f32 %v1637, %v1658
  %v1678 = vmax.f32 %v1638, %v1653
  %v1679 = vmax.f32 %v1639, %v1659
  %v1680 = vmax.f32 %v1676, %v1674
  %v1681 = vmax.f32 %v1677, %v1668
  %v1682 = vmax.f32 %v1678, %v1675
  %v1683 = vmax.f32 %v1679, %v1669
  %v1684 = vpack.c.bf16 %v1682, %v1680
  %v1685 = vpack.c.bf16 %v1683, %v1681
  %v1704 = vunpack.c.l.b16 %v1316
  %v1705 = vunpack.c.l.b16 %v1317
  %v1706 = vunpack.c.l.b16 %v1318
  %v1707 = vunpack.c.l.b16 %v1319
  %v1708 = vunpack.c.l.b16 %v1320
  %v1709 = vunpack.c.l.b16 %v1321
  %v1710 = vunpack.c.l.b16 %v1322
  %v1711 = vunpack.c.l.b16 %v1323
  %v1712 = vunpack.c.l.b16 %v1324
  %v1713 = vunpack.c.l.b16 %v1325
  %v1714 = vunpack.c.l.b16 %v1326
  %v1715 = vunpack.c.l.b16 %v1327
  %v1716 = vunpack.c.l.b16 %v1328
  %v1717 = vunpack.c.l.b16 %v1329
  %v1718 = vunpack.c.l.b16 %v1330
  %v1719 = vunpack.c.l.b16 %v1331
  %v1720 = vunpack.c.l.b16 %v1332
  %v1721 = vunpack.c.l.b16 %v1333
  %v1722 = vpack.c.b16 %v1705, %v1704
  %v1723 = vpack.c.b16 %v1707, %v1706
  %v1724 = vpack.c.b16 %v1709, %v1708
  %v1725 = vpack.c.b16 %v1711, %v1710
  %v1726 = vpack.c.b16 %v1713, %v1712
  %v1727 = vpack.c.b16 %v1715, %v1714
  %v1728 = vpack.c.b16 %v1717, %v1716
  %v1729 = vpack.c.b16 %v1719, %v1718
  %v1730 = vpack.c.b16 %v1721, %v1720
  %v1740 = vsel %vm702, %v1685, 0
  %v1743 = vsel %vm483, %v1730, 0
  %1745 = vmatprep.subr.bf16.mxu0 0
  %1746 = vmatpush1.bf16.msra.mxu0 %v1722
  %1747 = vmatprep.subr.bf16.mxu0 0
  %1748 = vmatpush1.bf16.msra.mxu0 %v1723
  %1749 = vmatprep.subr.bf16.mxu0 0
  %1750 = vmatpush1.bf16.msra.mxu0 %v1724
  %1751 = vmatprep.subr.bf16.mxu0 0
  %1752 = vmatpush1.bf16.msra.mxu0 %v1725
  %1753 = vmatprep.subr.bf16.mxu0 0
  %1754 = vmatpush1.bf16.msra.mxu0 %v1726
  %1755 = vmatprep.subr.bf16.mxu0 0
  %1756 = vmatpush1.bf16.msra.mxu0 %v1727
  %1757 = vmatprep.subr.bf16.mxu0 0
  %1758 = vmatpush1.bf16.msra.mxu0 %v1728
  %1759 = vmatprep.subr.bf16.mxu0 0
  %1760 = vmatpush1.bf16.msra.mxu0 %v1729
  %1761 = vmatprep.subr.bf16.mxu0 0
  %1762 = vmatpush1.bf16.msra.mxu0 %v1743
  %1763 = vmatprep.subr.bf16.mxu0 0
  %1764 = vmatpush1.bf16.msra.mxu0 0
  %1765 = vmatprep.subr.bf16.mxu0 0
  %1766 = vmatpush1.bf16.msra.mxu0 0
  %1767 = vmatprep.subr.bf16.mxu0 0
  %1768 = vmatpush1.bf16.msra.mxu0 0
  %1769 = vmatprep.subr.bf16.mxu0 0
  %1770 = vmatpush1.bf16.msra.mxu0 0
  %1771 = vmatprep.subr.bf16.mxu0 0
  %1772 = vmatpush1.bf16.msra.mxu0 0
  %1773 = vmatprep.subr.bf16.mxu0 0
  %1774 = vmatpush1.bf16.msra.mxu0 0
  %1775 = vmatprep.subr.bf16.mxu0 0
  %1776 = vmatpush1.bf16.msra.mxu0 0
  %1777 = vmatprep.mubr.bf16.mxu0 %v1740
  %1778 = vmatmul.mubr.bf16.gmra.mrb[0].mxu0 %v1684
  %v1779 = vpop.f32.mrb[0].mxu0
  %v1780 = vadd.f32 0.0, %v1779
  %v1781 = vpop.f32.mrb[0].mxu0
  %v1782 = vpop.f32.mrb[0].mxu0
  %v1783 = vadd.f32 0.0, %v1782
  %v1784 = vpop.f32.mrb[0].mxu0
  %1785 = vdwg.mxu0
  %v1786 = vld [vmem:[%s13] sm:$0xff]
  %v1787 = vld [vmem:[%s13 + $0x8] sm:$0xff]
  %v1788 = vld [vmem:[%s13 + $0x10] sm:$0xff]
  %v1789 = vld [vmem:[%s13 + $0x18] sm:$0xff]
  %v1790 = vld [vmem:[%s14] sm:$0xff]
  %v1791 = vld [vmem:[%s14 + $0x8] sm:$0xff]
  %v1792 = vld [vmem:[%s14 + $0x10] sm:$0xff]
  %v1793 = vld [vmem:[%s14 + $0x18] sm:$0xff]
  %v1794 = vld [vmem:[%s15] sm:$0xff]
  %v1795 = vld [vmem:[%s15 + $0x8] sm:$0xff]
  %v1796 = vld [vmem:[%s15 + $0x10] sm:$0xff]
  %v1797 = vld [vmem:[%s15 + $0x18] sm:$0xff]
  %v1798 = vld [vmem:[%s16] sm:$0x1]
  %v1799 = vld [vmem:[%s17] sm:$0x1]
  %v1800 = vld [vmem:[%s18] sm:$0xf]
  %v1801 = vld [vmem:[%s18 + $0x4] sm:$0xf]
  %v1802 = vld [vmem:[%s18 + $0x8] sm:$0xf]
  %v1803 = vld [vmem:[%s18 + $0xc] sm:$0xf]
  %v1804 = vld [vmem:[%s18 + $0x10] sm:$0xf]
  %v1805 = vld [vmem:[%s18 + $0x14] sm:$0x7]
  %v1806 = vpack.c.bf16 %v1783, %v1780
  %1808 = vrot.lane.b32.xlu0 %v1806, 127
  %v1809 = vpop.permute.xlu0 %1808
  %1811 = vrot.lane.b32.xlu0 %v1806, 126
  %v1812 = vpop.permute.xlu0 %1811
  %1814 = vrot.lane.b32.xlu0 %v1806, 125
  %v1815 = vpop.permute.xlu0 %1814
  %1817 = vrot.lane.b32.xlu0 %v1806, 124
  %v1818 = vpop.permute.xlu0 %1817
  %1820 = vrot.lane.b32.xlu0 %v1806, 123
  %v1821 = vpop.permute.xlu0 %1820
  %1823 = vrot.lane.b32.xlu0 %v1806, 122
  %v1824 = vpop.permute.xlu0 %1823
  %1826 = vrot.lane.b32.xlu0 %v1806, 121
  %v1827 = vpop.permute.xlu0 %1826
  %1829 = vrot.lane.b32.xlu0 %v1806, 120
  %v1830 = vpop.permute.xlu0 %1829
  %1832 = vrot.lane.b32.xlu0 %v1806, 119
  %v1833 = vpop.permute.xlu0 %1832
  %1835 = vrot.lane.b32.xlu0 %v1806, 118
  %v1836 = vpop.permute.xlu0 %1835
  %1838 = vrot.lane.b32.xlu0 %v1806, 117
  %v1839 = vpop.permute.xlu0 %1838
  %1841 = vrot.lane.b32.xlu0 %v1806, 116
  %v1842 = vpop.permute.xlu0 %1841
  %1844 = vrot.lane.b32.xlu0 %v1806, 115
  %v1845 = vpop.permute.xlu0 %1844
  %1847 = vrot.lane.b32.xlu0 %v1806, 114
  %v1848 = vpop.permute.xlu0 %1847
  %v1854 = vunpack.c.l.b16 %v1786
  %v1855 = vunpack.c.h.b16 %v1786
  %v1856 = vunpack.c.l.b16 %v1787
  %v1857 = vunpack.c.h.b16 %v1787
  %v1858 = vunpack.c.l.b16 %v1788
  %v1859 = vunpack.c.h.b16 %v1788
  %v1860 = vunpack.c.l.b16 %v1789
  %v1861 = vunpack.c.h.b16 %v1789
  %v1862 = vpack.c.b16 %v1856, %v1854
  %v1863 = vpack.c.b16 %v1857, %v1855
  %v1864 = vpack.c.b16 %v1860, %v1858
  %v1865 = vpack.c.b16 %v1861, %v1859
  %vm1868 = vcmask 916480
  %v1870 = vsel %vm1868, %v1863, 0
  %v1873 = vsel %vm1868, %v1865, 0
  %1875 = vmatprep.subr.bf16.mxu0 0
  %1876 = vmatpush1.bf16.msra.mxu0 %v1806
  %1877 = vmatprep.subr.bf16.mxu0 0
  %1878 = vmatpush1.bf16.msra.mxu0 %v1809
  %1879 = vmatprep.subr.bf16.mxu0 0
  %1880 = vmatpush1.bf16.msra.mxu0 %v1812
  %1881 = vmatprep.subr.bf16.mxu0 0
  %1882 = vmatpush1.bf16.msra.mxu0 %v1815
  %1883 = vmatprep.subr.bf16.mxu0 0
  %1884 = vmatpush1.bf16.msra.mxu0 %v1818
  %1885 = vmatprep.subr.bf16.mxu0 0
  %1886 = vmatpush1.bf16.msra.mxu0 %v1821
  %1887 = vmatprep.subr.bf16.mxu0 0
  %1888 = vmatpush1.bf16.msra.mxu0 %v1824
  %1889 = vmatprep.subr.bf16.mxu0 0
  %1890 = vmatpush1.bf16.msra.mxu0 %v1827
  %1891 = vmatprep.subr.bf16.mxu0 0
  %1892 = vmatpush1.bf16.msra.mxu0 %v1830
  %1893 = vmatprep.subr.bf16.mxu0 0
  %1894 = vmatpush1.bf16.msra.mxu0 %v1833
  %1895 = vmatprep.subr.bf16.mxu0 0
  %1896 = vmatpush1.bf16.msra.mxu0 %v1836
  %1897 = vmatprep.subr.bf16.mxu0 0
  %1898 = vmatpush1.bf16.msra.mxu0 %v1839
  %1899 = vmatprep.subr.bf16.mxu0 0
  %1900 = vmatpush1.bf16.msra.mxu0 %v1842
  %1901 = vmatprep.subr.bf16.mxu0 0
  %1902 = vmatpush1.bf16.msra.mxu0 %v1845
  %1903 = vmatprep.subr.bf16.mxu0 0
  %1904 = vmatpush1.bf16.msra.mxu0 %v1848
  %1905 = vmatprep.subr.bf16.mxu0 0
  %1906 = vmatpush1.bf16.msra.mxu0 0
  %1907 = vmatprep.mubr.bf16.mxu0 %v1870
  %1908 = vmatmul.mubr.bf16.gmra.mrb[0].mxu0 %v1862
  %v1909 = vpop.f32.mrb[0].mxu0
  %v1910 = vadd.f32 0.0, %v1909
  %v1911 = vpop.f32.mrb[0].mxu0
  %v1912 = vpop.f32.mrb[0].mxu0
  %v1913 = vadd.f32 0.0, %v1912
  %v1914 = vpop.f32.mrb[0].mxu0
  %1915 = vmatprep.mubr.bf16.mxu0 %v1873
  %1916 = vmatmul.mubr.bf16.gmra.mrb[0].mxu0 %v1864
  %v1917 = vpop.f32.mrb[0].mxu0
  %v1918 = vadd.f32 0.0, %v1917
  %v1919 = vpop.f32.mrb[0].mxu0
  %v1920 = vpop.f32.mrb[0].mxu0
  %v1921 = vadd.f32 0.0, %v1920
  %v1922 = vpop.f32.mrb[0].mxu0
  %1923 = vdwg.mxu0
  %v1925 = vlaneseq
  %v1926 = vshrl.u32 %v1925, 7
  %v1927 = vsub.s32 0, %v1926
  %v1928 = vrot.slane %v1798, %v1927
  %v1930 = vmul.f32 %v1910, %v1928
  %v1931 = vmul.f32 %v1913, %v1928
  %v1932 = vmul.f32 %v1918, %v1928
  %v1933 = vmul.f32 %v1921, %v1928
  %vm1934 = vcmask 375808
  %v1935 = vsel %vm1934, %v1930, 0.0
  %1936 = vadd.xlane.f32.xlu0 %v1935
  %v1937 = vpop.xlane.xlu0 %1936
  %v1938 = vsel %vm1934, %v1931, 0.0
  %1939 = vadd.xlane.f32.xlu0 %v1938
  %v1940 = vpop.xlane.xlu0 %1939
  %v1941 = vsel %vm1934, %v1932, 0.0
  %1942 = vadd.xlane.f32.xlu0 %v1941
  %v1943 = vpop.xlane.xlu0 %1942
  %v1944 = vsel %vm1934, %v1933, 0.0
  %1945 = vadd.xlane.f32.xlu0 %v1944
  %v1946 = vpop.xlane.xlu0 %1945
  %v1947 = vmul.f32 %v1930, %v1930
  %v1948 = vmul.f32 %v1931, %v1931
  %v1949 = vmul.f32 %v1932, %v1932
  %v1950 = vmul.f32 %v1933, %v1933
  %v1951 = vsel %vm1934, %v1947, 0.0
  %1952 = vadd.xlane.f32.xlu0 %v1951
  %v1953 = vpop.xlane.xlu0 %1952
  %v1954 = vsel %vm1934, %v1948, 0.0
  %1955 = vadd.xlane.f32.xlu0 %v1954
  %v1956 = vpop.xlane.xlu0 %1955
  %v1957 = vsel %vm1934, %v1949, 0.0
  %1958 = vadd.xlane.f32.xlu0 %v1957
  %v1959 = vpop.xlane.xlu0 %1958
  %v1960 = vsel %vm1934, %v1950, 0.0
  %1961 = vadd.xlane.f32.xlu0 %v1960
  %v1962 = vpop.xlane.xlu0 %1961
  %v1963 = vrcp.pop 16.0
  %v1964 = vmul.f32 %v1937, %v1963
  %v1965 = vmul.f32 %v1940, %v1963
  %v1966 = vmul.f32 %v1943, %v1963
  %v1967 = vmul.f32 %v1946, %v1963
  %v1968 = vmul.f32 %v1953, %v1963
  %v1969 = vmul.f32 %v1956, %v1963
  %v1970 = vmul.f32 %v1959, %v1963
  %v1971 = vmul.f32 %v1962, %v1963
  %v1972 = vmul.f32 %v1964, %v1964
  %v1973 = vmul.f32 %v1965, %v1965
  %v1974 = vmul.f32 %v1966, %v1966
  %v1975 = vmul.f32 %v1967, %v1967
  %v1976 = vsub.f32 %v1968, %v1972
  %v1977 = vsub.f32 %v1969, %v1973
  %v1978 = vsub.f32 %v1970, %v1974
  %v1979 = vsub.f32 %v1971, %v1975
  %v1980 = vmax.f32 %v1976, 0.0
  %v1981 = vmax.f32 %v1977, 0.0
  %v1982 = vmax.f32 %v1978, 0.0
  %v1983 = vmax.f32 %v1979, 0.0
  %v1984 = vadd.f32 %v1980, 1e-05
  %v1985 = vadd.f32 %v1981, 1e-05
  %v1986 = vadd.f32 %v1982, 1e-05
  %v1987 = vadd.f32 %v1983, 1e-05
  %v1988 = vrsqrt.pop %v1984
  %v1989 = vrsqrt.pop %v1985
  %v1990 = vrsqrt.pop %v1986
  %v1991 = vrsqrt.pop %v1987
  %v1992 = vmul.f32 %v1790, %v1988
  %v1993 = vmul.f32 %v1791, %v1989
  %v1994 = vmul.f32 %v1792, %v1990
  %v1995 = vmul.f32 %v1793, %v1991
  %v1996 = vmul.f32 %v1964, %v1992
  %v1997 = vmul.f32 %v1965, %v1993
  %v1998 = vmul.f32 %v1966, %v1994
  %v1999 = vmul.f32 %v1967, %v1995
  %v2000 = vsub.f32 %v1794, %v1996
  %v2001 = vsub.f32 %v1795, %v1997
  %v2002 = vsub.f32 %v1796, %v1998
  %v2003 = vsub.f32 %v1797, %v1999
  %2005 = vset.pattern.permute.xlu0 0
  %2006 = vperm.xlu0 %2005, %v1992
  %v2007 = vpop.permute.xlu0 %2006
  %2010 = vset.pattern.permute.xlu0 0
  %2011 = vperm.xlu0 %2010, %v1993
  %v2012 = vpop.permute.xlu0 %2011
  %2015 = vset.pattern.permute.xlu0 0
  %2016 = vperm.xlu0 %2015, %v1994
  %v2017 = vpop.permute.xlu0 %2016
  %2020 = vset.pattern.permute.xlu0 0
  %2021 = vperm.xlu0 %2020, %v1995
  %v2022 = vpop.permute.xlu0 %2021
  %v2024 = vmul.f32 %v1910, %v2007
  %v2025 = vmul.f32 %v1913, %v2012
  %v2026 = vmul.f32 %v1918, %v2017
  %v2027 = vmul.f32 %v1921, %v2022
  %2029 = vset.pattern.permute.xlu0 0
  %2030 = vperm.xlu0 %2029, %v2000
  %v2031 = vpop.permute.xlu0 %2030
  %2034 = vset.pattern.permute.xlu0 0
  %2035 = vperm.xlu0 %2034, %v2001
  %v2036 = vpop.permute.xlu0 %2035
  %2039 = vset.pattern.permute.xlu0 0
  %2040 = vperm.xlu0 %2039, %v2002
  %v2041 = vpop.permute.xlu0 %2040
  %2044 = vset.pattern.permute.xlu0 0
  %2045 = vperm.xlu0 %2044, %v2003
  %v2046 = vpop.permute.xlu0 %2045
  %v2048 = vadd.f32 %v2024, %v2031
  %v2049 = vadd.f32 %v2025, %v2036
  %v2050 = vadd.f32 %v2026, %v2041
  %v2051 = vadd.f32 %v2027, %v2046
  %v2052 = vmax.f32 %v2048, 0.0
  %v2053 = vmax.f32 %v2049, 0.0
  %v2054 = vmax.f32 %v2050, 0.0
  %v2055 = vmax.f32 %v2051, 0.0
  %v2057 = vlaneseq
  %v2058 = vshrl.u32 %v2057, 7
  %v2059 = vsub.s32 0, %v2058
  %v2060 = vrot.slane %v1799, %v2059
  %v2062 = vmul.f32 %v2052, %v2060
  %v2063 = vmul.f32 %v2053, %v2060
  %v2064 = vmul.f32 %v2054, %v2060
  %v2065 = vmul.f32 %v2055, %v2060
  %2070 = vrot.lane.b32.xlu0 %v2062, 126
  %v2071 = vpop.permute.xlu0 %2070
  %2072 = vrot.lane.b32.xlu0 %v2063, 126
  %v2073 = vpop.permute.xlu0 %2072
  %2074 = vrot.lane.b32.xlu0 %v2064, 126
  %v2075 = vpop.permute.xlu0 %2074
  %2076 = vrot.lane.b32.xlu0 %v2065, 126
  %v2077 = vpop.permute.xlu0 %2076
  %vm2082 = vcmask 359424
  %v2083 = vsel %vm2082, %v2071, 0.0
  %v2084 = vsel %vm2082, %v2073, 0.0
  %v2085 = vsel %vm2082, %v2075, 0.0
  %v2086 = vsel %vm2082, %v2077, 0.0
  %2087 = vrot.lane.b32.xlu0 %v2062, 2
  %v2088 = vpop.permute.xlu0 %2087
  %2089 = vrot.lane.b32.xlu0 %v2063, 2
  %v2090 = vpop.permute.xlu0 %2089
  %2091 = vrot.lane.b32.xlu0 %v2064, 2
  %v2092 = vpop.permute.xlu0 %2091
  %2093 = vrot.lane.b32.xlu0 %v2065, 2
  %v2094 = vpop.permute.xlu0 %2093
  %v2099 = vsel %vm822, 0.0, %v2088
  %v2100 = vsel %vm822, 0.0, %v2090
  %v2101 = vsel %vm822, 0.0, %v2092
  %v2102 = vsel %vm822, 0.0, %v2094
  %v2103 = vmax.f32 %v2062, %v2083
  %v2104 = vmax.f32 %v2063, %v2084
  %v2105 = vmax.f32 %v2064, %v2085
  %v2106 = vmax.f32 %v2065, %v2086
  %v2107 = vmax.f32 %v2103, %v2099
  %v2108 = vmax.f32 %v2104, %v2100
  %v2109 = vmax.f32 %v2105, %v2101
  %v2110 = vmax.f32 %v2106, %v2102
  %v2111 = vpack.c.bf16 %v2108, %v2107
  %v2112 = vpack.c.bf16 %v2110, %v2109
  %v2119 = vunpack.c.l.b16 %v1800
  %v2120 = vunpack.c.l.b16 %v1801
  %v2121 = vunpack.c.l.b16 %v1802
  %v2122 = vunpack.c.l.b16 %v1803
  %v2123 = vunpack.c.l.b16 %v1804
  %v2124 = vunpack.c.l.b16 %v1805
  %v2125 = vpack.c.b16 %v2120, %v2119
  %v2126 = vpack.c.b16 %v2122, %v2121
  %v2127 = vpack.c.b16 %v2124, %v2123
  %v2131 = vsel %vm1934, %v2111, 0
  %v2134 = vsel %vm1934, %v2112, 0
  %v2137 = vsel %vm483, %v2127, 0
  %2139 = vmatprep.subr.bf16.mxu0 0
  %2140 = vmatpush1.bf16.msra.mxu0 %v2125
  %2141 = vmatprep.subr.bf16.mxu0 0
  %2142 = vmatpush1.bf16.msra.mxu0 %v2126
  %2143 = vmatprep.subr.bf16.mxu0 0
  %2144 = vmatpush1.bf16.msra.mxu0 %v2137
  %2145 = vmatprep.subr.bf16.mxu0 0
  %2146 = vmatpush1.bf16.msra.mxu0 0
  %2147 = vmatprep.subr.bf16.mxu0 0
  %2148 = vmatpush1.bf16.msra.mxu0 0
  %2149 = vmatprep.subr.bf16.mxu0 0
  %2150 = vmatpush1.bf16.msra.mxu0 0
  %2151 = vmatprep.subr.bf16.mxu0 0
  %2152 = vmatpush1.bf16.msra.mxu0 0
  %2153 = vmatprep.subr.bf16.mxu0 0
  %2154 = vmatpush1.bf16.msra.mxu0 0
  %2155 = vmatprep.subr.bf16.mxu0 0
  %2156 = vmatpush1.bf16.msra.mxu0 0
  %2157 = vmatprep.subr.bf16.mxu0 0
  %2158 = vmatpush1.bf16.msra.mxu0 0
  %2159 = vmatprep.subr.bf16.mxu0 0
  %2160 = vmatpush1.bf16.msra.mxu0 0
  %2161 = vmatprep.subr.bf16.mxu0 0
  %2162 = vmatpush1.bf16.msra.mxu0 0
  %2163 = vmatprep.subr.bf16.mxu0 0
  %2164 = vmatpush1.bf16.msra.mxu0 0
  %2165 = vmatprep.subr.bf16.mxu0 0
  %2166 = vmatpush1.bf16.msra.mxu0 0
  %2167 = vmatprep.subr.bf16.mxu0 0
  %2168 = vmatpush1.bf16.msra.mxu0 0
  %2169 = vmatprep.subr.bf16.mxu0 0
  %2170 = vmatpush1.bf16.msra.mxu0 0
  %2171 = vmatprep.mubr.bf16.mxu0 0
  %2172 = vmatmul.mubr.bf16.gmra.mrb[0].mxu0 %v2131
  %v2173 = vpop.f32.mrb[0].mxu0
  %v2174 = vadd.f32 0.0, %v2173
  %v2175 = vpop.f32.mrb[0].mxu0
  %v2176 = vpop.f32.mrb[0].mxu0
  %v2177 = vadd.f32 0.0, %v2176
  %v2178 = vpop.f32.mrb[0].mxu0
  %2179 = vmatprep.mubr.bf16.mxu0 0
  %2180 = vmatmul.mubr.bf16.gmra.mrb[0].mxu0 %v2134
  %v2181 = vpop.f32.mrb[0].mxu0
  %v2182 = vadd.f32 0.0, %v2181
  %v2183 = vpop.f32.mrb[0].mxu0
  %v2184 = vpop.f32.mrb[0].mxu0
  %v2185 = vadd.f32 0.0, %v2184
  %v2186 = vpop.f32.mrb[0].mxu0
  %2187 = vdwg.mxu0
  %v2188 = vmul.f32 %v2174, 0.25
  %v2189 = vmul.f32 %v2177, 0.25
  %v2190 = vmul.f32 %v2182, 0.25
  %v2191 = vmul.f32 %v2185, 0.25
  %v2192 = vld [vmem:[%s19] sm:$0xf]
  %v2193 = vld [vmem:[%s19 + $0x4] sm:$0x1]
  %v2194 = vpack.c.bf16 %v2189, %v2188
  %v2195 = vpack.c.bf16 %v2191, %v2190
  %v2196 = vld [vmem:[%s20] sm:$0xff]
  %v2197 = vld [vmem:[%s20 + $0x8] sm:$0x3]
  %2199 = vset.pattern.permute.xlu0 0
  %2200 = vperm.xlu0 %2199, %v2196
  %v2201 = vpop.permute.xlu0 %2200
  %2204 = vset.pattern.permute.xlu0 0
  %2205 = vperm.xlu0 %2204, %v2197
  %v2206 = vpop.permute.xlu0 %2205
  %v2210 = vunpack.c.l.b16 %v2192
  %v2211 = vunpack.c.l.b16 %v2193
  %v2212 = vpack.c.b16 %v2211, %v2210
  %vm2213 = vcmask 261120
  %v2215 = vsel %vm2213, %v2212, 0
  %2217 = vmatprep.subr.bf16.mxu0 0
  %2218 = vmatpush1.bf16.msra.mxu0 %v2194
  %2219 = vmatprep.subr.bf16.mxu0 0
  %2220 = vmatpush1.bf16.msra.mxu0 %v2195
  %2221 = vmatprep.subr.bf16.mxu0 0
  %2222 = vmatpush1.bf16.msra.mxu0 0
  %2223 = vmatprep.subr.bf16.mxu0 0
  %2224 = vmatpush1.bf16.msra.mxu0 0
  %2225 = vmatprep.subr.bf16.mxu0 0
  %2226 = vmatpush1.bf16.msra.mxu0 0
  %2227 = vmatprep.subr.bf16.mxu0 0
  %2228 = vmatpush1.bf16.msra.mxu0 0
  %2229 = vmatprep.subr.bf16.mxu0 0
  %2230 = vmatpush1.bf16.msra.mxu0 0
  %2231 = vmatprep.subr.bf16.mxu0 0
  %2232 = vmatpush1.bf16.msra.mxu0 0
  %2233 = vmatprep.subr.bf16.mxu0 0
  %2234 = vmatpush1.bf16.msra.mxu0 0
  %2235 = vmatprep.subr.bf16.mxu0 0
  %2236 = vmatpush1.bf16.msra.mxu0 0
  %2237 = vmatprep.subr.bf16.mxu0 0
  %2238 = vmatpush1.bf16.msra.mxu0 0
  %2239 = vmatprep.subr.bf16.mxu0 0
  %2240 = vmatpush1.bf16.msra.mxu0 0
  %2241 = vmatprep.subr.bf16.mxu0 0
  %2242 = vmatpush1.bf16.msra.mxu0 0
  %2243 = vmatprep.subr.bf16.mxu0 0
  %2244 = vmatpush1.bf16.msra.mxu0 0
  %2245 = vmatprep.subr.bf16.mxu0 0
  %2246 = vmatpush1.bf16.msra.mxu0 0
  %2247 = vmatprep.subr.bf16.mxu0 0
  %2248 = vmatpush1.bf16.msra.mxu0 0
  %2249 = vmatprep.mubr.bf16.mxu0 0
  %2250 = vmatmul.mubr.bf16.gmra.mrb[0].mxu0 %v2215
  %v2251 = vpop.f32.mrb[0].mxu0
  %v2252 = vadd.f32 %v2201, %v2251
  %v2253 = vpop.f32.mrb[0].mxu0
  %v2254 = vpop.f32.mrb[0].mxu0
  %v2255 = vadd.f32 %v2206, %v2254
  %v2256 = vpop.f32.mrb[0].mxu0
  %2257 = vdwg.mxu0
  %2258 = vst.msk [vmem:[%s21] sm:$0xff] %vm822, %v2252
  %vm2259 = vcmask 9216
  %2260 = vst.msk [vmem:[%s21 + $0x8] sm:$0x3] %vm2259, %v2255
  // Predicated region
  $region86: #{conv1dnet_forward.1} parent=0 // pred_check
    _
  $region87: #{conv1dnet_forward.1} parent=0 // pred_check_branch
    %2262 = sbr.rel (0) target = $region89
  $region88: #{conv1dnet_forward.1} parent=0 // pred_region
    _
  $region89: #{conv1dnet_forward.1} parent=0 // pred_fallthru
    _
  // Predicated region
  $region90: #{conv1dnet_forward.1} parent=0 // pred_check
    _
  $region91: #{conv1dnet_forward.1} parent=0 // pred_check_branch
    %2264 = sbr.rel (0) target = $region93
  $region92: #{conv1dnet_forward.1} parent=0 // pred_region
    _
  $region93: #{conv1dnet_forward.1} parent=0 // pred_fallthru
    _

</llo_original>
